<compile_context>
chip_gen: v7x
topology: tpu7x:2x2x1
jax: 0.10.0
libtpu: 0.0.40
codegen_flags: <defaults>
</compile_context>

<pallas_src>
import math

import jax
import jax.numpy as jnp
from jax import lax
from jax.experimental import pallas as pl
from jax.experimental.pallas import tpu as pltpu

MASK_BIAS = -1e30  # additive bias for padded keys (attention_mask == 0)


# ---------------------------------------------------------------------------
# PE table (matches the PyTorch buffer: shape [max_len, 1, embed_size])
# ---------------------------------------------------------------------------
def _build_pe_table(max_len: int, embed_size: int) -> jnp.ndarray:
    position = jnp.arange(max_len, dtype=jnp.float32)[:, None]
    div_term = jnp.exp(
        jnp.arange(0, embed_size, 2, dtype=jnp.float32)
        * (-math.log(10000.0) / embed_size))
    ang = position * div_term
    pe = jnp.zeros((max_len, embed_size), dtype=jnp.float32)
    pe = pe.at[:, 0::2].set(jnp.sin(ang))
    pe = pe.at[:, 1::2].set(jnp.cos(ang))
    return pe[:, None, :]                       # [max_len, 1, E]


# ---------------------------------------------------------------------------
# Kernel 1: embedding gather (one-hot @ table on the MXU) + positional encoding
# ---------------------------------------------------------------------------
def _embed_pe_kernel(ids_ref, table_ref, pe_ref, o_ref, onehot):
    # ids_ref  : SMEM (B, S) int32   (scalar-prefetched token ids)
    # table_ref: VMEM (V, E) f32     (full embedding table, grid-invariant block)
    # pe_ref   : VMEM (1, 1, E) f32  (PE row b, selected by the BlockSpec index_map)
    # o_ref    : VMEM (1, S, E)      (embedded + PE for batch element b)
    # onehot   : VMEM (S, V) f32 scratch
    b = pl.program_id(0)
    S, V = onehot.shape
    col = lax.broadcasted_iota(jnp.int32, (1, V), 1)
    for s in range(S):                          # S is small & static -> unrolled
        onehot[pl.ds(s, 1), :] = (col == ids_ref[b, s]).astype(jnp.float32)
    emb = jnp.dot(onehot[...], table_ref[...],
                  preferred_element_type=jnp.float32)        # (S, E)
    pe = pe_ref[...].reshape(1, -1)                          # (1, E)
    o_ref[0] = (emb + pe).astype(o_ref.dtype)


def embed_positional(input_ids, emb_table, pe):
    B, S = input_ids.shape
    V, E = emb_table.shape
    return pl.pallas_call(
        _embed_pe_kernel,
        out_shape=jax.ShapeDtypeStruct((B, S, E), jnp.float32),
        grid_spec=pltpu.PrefetchScalarGridSpec(
            num_scalar_prefetch=1,
            grid=(B,),
            in_specs=[
                pl.BlockSpec((V, E), lambda b, ids: (0, 0)),
                pl.BlockSpec((1, 1, E), lambda b, ids: (b, 0, 0)),
            ],
            out_specs=pl.BlockSpec((1, S, E), lambda b, ids: (b, 0, 0)),
            scratch_shapes=[pltpu.VMEM((S, V), jnp.float32)],
        ),
        compiler_params=pltpu.CompilerParams(
            dimension_semantics=("parallel",)),
    )(input_ids.astype(jnp.int32), emb_table, pe)


# ---------------------------------------------------------------------------
# Shared multi-head-attention core (values already loaded into registers)
# ---------------------------------------------------------------------------
def _mha_relu_core(x, wqkv_ref, bqkv_ref, wo_ref, bo_ref, mb, num_heads, nq):
    """x: (S, E) f32.  Returns relu(out_proj(MHA(x))) for query rows [0:nq]."""
    S, E = x.shape
    dh = E // num_heads
    qkv = jnp.dot(x, wqkv_ref[...],
                  preferred_element_type=jnp.float32) + bqkv_ref[...]   # (S, 3E)
    q = qkv[:nq, :E]
    k = qkv[:, E:2 * E]
    v = qkv[:, 2 * E:]
    scale = 1.0 / math.sqrt(dh)
    acc = jnp.zeros((nq, E), jnp.float32)
    for h in range(num_heads):                                  # static unroll
        qh = q[:, h * dh:(h + 1) * dh]                          # (nq, dh)
        kh = k[:, h * dh:(h + 1) * dh]                          # (S, dh)
        vh = v[:, h * dh:(h + 1) * dh]                          # (S, dh)
        s = lax.dot_general(qh, kh, (((1,), (1,)), ((), ())),
                            preferred_element_type=jnp.float32) * scale + mb
        m = jnp.max(s, axis=-1, keepdims=True)
        p = jnp.exp(s - m)
        attn = p / jnp.sum(p, axis=-1, keepdims=True)
        ctx_h = jnp.dot(attn.astype(jnp.float32), vh,
                        preferred_element_type=jnp.float32)     # (nq, dh)
        # ctx @ Wo == sum_h ctx_h @ Wo[h*dh:(h+1)*dh, :]  (avoids a lane concat)
        acc = acc + jnp.dot(ctx_h, wo_ref[h * dh:(h + 1) * dh, :],
                            preferred_element_type=jnp.float32)
    out = acc + bo_ref[...]
    return jnp.maximum(out, 0.0)


# ---------------------------------------------------------------------------
# Kernel 2: MultiheadAttention (full sequence) + fused ReLU
# ---------------------------------------------------------------------------
def _make_mha_relu_kernel(num_heads):
    def kernel(x_ref, wqkv_ref, bqkv_ref, wo_ref, bo_ref, mb_ref, o_ref):
        x = x_ref[0].astype(jnp.float32)        # (S, E)
        mb = mb_ref[0]                          # (1, S) additive key-padding bias
        out = _mha_relu_core(x, wqkv_ref, bqkv_ref, wo_ref, bo_ref, mb,
                             num_heads, nq=x.shape[0])
        o_ref[0] = out.astype(o_ref.dtype)
    return kernel


def mha_relu(x, wqkv_t, bqkv, wo_t, bo, mask_bias, num_heads):
    B, S, E = x.shape
    return pl.pallas_call(
        _make_mha_relu_kernel(num_heads),
        out_shape=jax.ShapeDtypeStruct((B, S, E), x.dtype),
        grid_spec=pltpu.PrefetchScalarGridSpec(
            num_scalar_prefetch=0,
            grid=(B,),
            in_specs=[
                pl.BlockSpec((1, S, E), lambda b: (b, 0, 0)),
                pl.BlockSpec((E, 3 * E), lambda b: (0, 0)),
                pl.BlockSpec((1, 3 * E), lambda b: (0, 0)),
                pl.BlockSpec((E, E), lambda b: (0, 0)),
                pl.BlockSpec((1, E), lambda b: (0, 0)),
                pl.BlockSpec((1, 1, S), lambda b: (b, 0, 0)),
            ],
            out_specs=pl.BlockSpec((1, S, E), lambda b: (b, 0, 0)),
        ),
        compiler_params=pltpu.CompilerParams(
            dimension_semantics=("parallel",)),
    )(x, wqkv_t, bqkv, wo_t, bo, mask_bias)


# ---------------------------------------------------------------------------
# Kernel 3: MultiheadAttention (query position 0 only) + ReLU + dropout(eval) + fc
# ---------------------------------------------------------------------------
def _make_mha_relu_fc_kernel(num_heads):
    def kernel(x_ref, wqkv_ref, bqkv_ref, wo_ref, bo_ref, mb_ref,
               wfc_ref, bfc_ref, o_ref):
        x = x_ref[0].astype(jnp.float32)        # (S, E)
        mb = mb_ref[0]                          # (1, S)
        # Only out[:, 0, ...] is used downstream -> compute just query row 0.
        feat = _mha_relu_core(x, wqkv_ref, bqkv_ref, wo_ref, bo_ref, mb,
                              num_heads, nq=1)  # (1, E)
        # TODO(synk): training-mode dropout (p=0.5) not implemented; eval-mode identity.
        logits = jnp.dot(feat, wfc_ref[...],
                         preferred_element_type=jnp.float32) + bfc_ref[...]
        o_ref[0] = logits.astype(o_ref.dtype)
    return kernel


def mha_relu_fc(x, wqkv_t, bqkv, wo_t, bo, mask_bias, wfc_t, bfc, num_heads):
    B, S, E = x.shape
    C = wfc_t.shape[1]
    out = pl.pallas_call(
        _make_mha_relu_fc_kernel(num_heads),
        out_shape=jax.ShapeDtypeStruct((B, 1, C), x.dtype),
        grid_spec=pltpu.PrefetchScalarGridSpec(
            num_scalar_prefetch=0,
            grid=(B,),
            in_specs=[
                pl.BlockSpec((1, S, E), lambda b: (b, 0, 0)),
                pl.BlockSpec((E, 3 * E), lambda b: (0, 0)),
                pl.BlockSpec((1, 3 * E), lambda b: (0, 0)),
                pl.BlockSpec((E, E), lambda b: (0, 0)),
                pl.BlockSpec((1, E), lambda b: (0, 0)),
                pl.BlockSpec((1, 1, S), lambda b: (b, 0, 0)),
                pl.BlockSpec((E, C), lambda b: (0, 0)),
                pl.BlockSpec((1, C), lambda b: (0, 0)),
            ],
            out_specs=pl.BlockSpec((1, 1, C), lambda b: (b, 0, 0)),
        ),
        compiler_params=pltpu.CompilerParams(
            dimension_semantics=("parallel",)),
    )(x, wqkv_t, bqkv, wo_t, bo, mask_bias, wfc_t, bfc)
    return out[:, 0, :]


# ---------------------------------------------------------------------------
# Full forward
# ---------------------------------------------------------------------------
def simple_attention2_forward(params, input_ids, attention_mask):
    # key_padding_mask = (attention_mask == 0) -> additive bias, shaped [B, 1, S]
    mask_bias = jnp.where(attention_mask == 0, MASK_BIAS, 0.0).astype(jnp.float32)
    mask_bias = mask_bias[:, None, :]
    x = embed_positional(input_ids, params["emb_table"], params["pe"])
    x = mha_relu(x, params["wqkv1_t"], params["bqkv1"], params["wo1_t"],
                 params["bo1"], mask_bias, num_heads=1)
    logits = mha_relu_fc(x, params["wqkv2_t"], params["bqkv2"], params["wo2_t"],
                         params["bo2"], mask_bias,
                         params["wfc_t"], params["bfc"], num_heads=2)
    return logits


# ---------------------------------------------------------------------------
# Pure-JAX reference (mirrors the PyTorch module exactly, incl. the pe[:x.size(0)]
# batch-index behaviour and eval-mode dropout)
# ---------------------------------------------------------------------------
def _mha_ref(x, wqkv_t, bqkv, wo_t, bo, key_pad_mask, num_heads):
    B, S, E = x.shape
    dh = E // num_heads
    qkv = jnp.einsum("bse,ef->bsf", x, wqkv_t) + bqkv[0]
    q, k, v = qkv[..., :E], qkv[..., E:2 * E], qkv[..., 2 * E:]

    def split(t):
        return t.reshape(B, S, num_heads, dh).transpose(0, 2, 1, 3)

    qh, kh, vh = split(q), split(k), split(v)
    s = jnp.einsum("bhqd,bhkd->bhqk", qh, kh) / math.sqrt(dh)
    s = s + jnp.where(key_pad_mask, MASK_BIAS, 0.0)[:, None, None, :]
    p = jax.nn.softmax(s, axis=-1)
    ctx = jnp.einsum("bhqk,bhkd->bhqd", p, vh)
    ctx = ctx.transpose(0, 2, 1, 3).reshape(B, S, E)
    return ctx @ wo_t + bo[0]


def simple_attention2_ref(params, input_ids, attention_mask):
    B = input_ids.shape[0]
    x = params["emb_table"][input_ids]
    x = x + params["pe"][:B]                     # pe indexed by x.size(0) == batch dim
    key_pad_mask = attention_mask == 0
    x = jax.nn.relu(_mha_ref(x, params["wqkv1_t"], params["bqkv1"],
                             params["wo1_t"], params["bo1"], key_pad_mask, 1))
    x = jax.nn.relu(_mha_ref(x, params["wqkv2_t"], params["bqkv2"],
                             params["wo2_t"], params["bo2"], key_pad_mask, 2))
    feat = x[:, 0, :]
    return feat @ params["wfc_t"] + params["bfc"][0]


# ---------------------------------------------------------------------------
# Deterministic parameter construction
# ---------------------------------------------------------------------------
def init_params(key, vocab_size, embed_size, num_class, max_len):
    E = embed_size
    ks = jax.random.split(key, 9)

    def lin(k, fan_in, shape, scale=1.0):
        return scale * jax.random.normal(k, shape, jnp.float32) / math.sqrt(fan_in)

    return dict(
        emb_table=jax.random.normal(ks[0], (vocab_size, E), jnp.float32),
        pe=_build_pe_table(max_len, E),
        wqkv1_t=lin(ks[1], E, (E, 3 * E)),
        bqkv1=lin(ks[2], E, (1, 3 * E), scale=0.1),
        wo1_t=lin(ks[3], E, (E, E)),
        bo1=jnp.zeros((1, E), jnp.float32),
        wqkv2_t=lin(ks[4], E, (E, 3 * E)),
        bqkv2=lin(ks[5], E, (1, 3 * E), scale=0.1),
        wo2_t=lin(ks[6], E, (E, E)),
        bo2=jnp.zeros((1, E), jnp.float32),
        wfc_t=lin(ks[7], E, (E, num_class)),
        bfc=lin(ks[8], E, (1, num_class), scale=0.1),
    )


if __name__ == "__main__":
    VOCAB, EMBED, NUM_CLASS, MAX_LEN = 1024, 128, 8, 512
    B, S = 2, 8

    key = jax.random.PRNGKey(0)
    k_param, k_ids = jax.random.split(key)
    params = init_params(k_param, VOCAB, EMBED, NUM_CLASS, MAX_LEN)

    input_ids = jax.random.randint(k_ids, (B, S), 0, VOCAB, dtype=jnp.int32)
    attention_mask = jnp.array([[1, 1, 1, 1, 1, 1, 0, 0],
                                [1, 1, 1, 1, 0, 0, 0, 0]], dtype=jnp.int32)

    logits = simple_attention2_forward(params, input_ids, attention_mask)
    logits = jax.block_until_ready(logits)

    ref = simple_attention2_ref(params, input_ids, attention_mask)
    assert logits.shape == (B, NUM_CLASS)
    assert bool(jnp.all(jnp.isfinite(logits)))
    max_diff = float(jnp.max(jnp.abs(logits - ref)))
    assert jnp.allclose(logits, ref, atol=3e-2, rtol=3e-2), f"max abs diff {max_diff}"

    print("KERNEL_OK")
</pallas_src>

<mosaic_0001>
module attributes {stable_mosaic.version = 11 : i64} {
  func.func @_embed_pe_kernel(%arg0: i32, %arg1: memref<2x8xi32, #tpu.memory_space<smem>>, %arg2: memref<1024x128xf32, #tpu.memory_space<vmem>>, %arg3: memref<1x1x128xf32, #tpu.memory_space<vmem>>, %arg4: memref<1x8x128xf32, #tpu.memory_space<vmem>>, %arg5: memref<8x1024xf32, #tpu.memory_space<vmem>>) attributes {dimension_semantics = [#tpu.dimension_semantics<parallel>], iteration_bounds = array<i64: 2>, scalar_prefetch = 1 : i64, scratch_operands = 1 : i64, tpu.core_type = #tpu.core_type<tc>, window_params = [{pipeline_mode = #tpu.pipeline_mode<synchronous>, transform_indices = @transform_0, window_bounds = array<i64: 1024, 128>}, {transform_indices = @transform_1, window_bounds = array<i64: 1, 1, 128>}, {transform_indices = @transform_2, window_bounds = array<i64: 1, 8, 128>}]} {
    %0 = tpu.iota {dimensions = array<i32: 1>} : vector<1x1024xi32>
    %1 = arith.index_cast %arg0 : i32 to index
    %c0 = arith.constant 0 : index
    %2 = memref.load %arg1[%1, %c0] : memref<2x8xi32, #tpu.memory_space<smem>>
    %3 = vector.broadcast %2 : i32 to vector<1x1024xi32>
    %4 = arith.cmpi eq, %0, %3 : vector<1x1024xi32>
    %5 = arith.extui %4 : vector<1x1024xi1> to vector<1x1024xi32>
    %6 = arith.sitofp %5 : vector<1x1024xi32> to vector<1x1024xf32>
    %c0_0 = arith.constant 0 : index
    %c0_1 = arith.constant 0 : index
    %7 = vector.load %arg5[%c0_0, %c0_1] : memref<8x1024xf32, #tpu.memory_space<vmem>>, vector<1x1024xf32>
    tpu.vector_store %arg5[%c0_0, %c0_1], %6 {strides = array<i32>} : memref<8x1024xf32, #tpu.memory_space<vmem>>, vector<1x1024xf32>,
    %8 = arith.index_cast %arg0 : i32 to index
    %c1 = arith.constant 1 : index
    %9 = memref.load %arg1[%8, %c1] : memref<2x8xi32, #tpu.memory_space<smem>>
    %10 = vector.broadcast %9 : i32 to vector<1x1024xi32>
    %11 = arith.cmpi eq, %0, %10 : vector<1x1024xi32>
    %12 = arith.extui %11 : vector<1x1024xi1> to vector<1x1024xi32>
    %13 = arith.sitofp %12 : vector<1x1024xi32> to vector<1x1024xf32>
    %c1_2 = arith.constant 1 : index
    %c0_3 = arith.constant 0 : index
    %14 = vector.load %arg5[%c1_2, %c0_3] : memref<8x1024xf32, #tpu.memory_space<vmem>>, vector<1x1024xf32>
    tpu.vector_store %arg5[%c1_2, %c0_3], %13 {strides = array<i32>} : memref<8x1024xf32, #tpu.memory_space<vmem>>, vector<1x1024xf32>,
    %15 = arith.index_cast %arg0 : i32 to index
    %c2 = arith.constant 2 : index
    %16 = memref.load %arg1[%15, %c2] : memref<2x8xi32, #tpu.memory_space<smem>>
    %17 = vector.broadcast %16 : i32 to vector<1x1024xi32>
    %18 = arith.cmpi eq, %0, %17 : vector<1x1024xi32>
    %19 = arith.extui %18 : vector<1x1024xi1> to vector<1x1024xi32>
    %20 = arith.sitofp %19 : vector<1x1024xi32> to vector<1x1024xf32>
    %c2_4 = arith.constant 2 : index
    %c0_5 = arith.constant 0 : index
    %21 = vector.load %arg5[%c2_4, %c0_5] : memref<8x1024xf32, #tpu.memory_space<vmem>>, vector<1x1024xf32>
    tpu.vector_store %arg5[%c2_4, %c0_5], %20 {strides = array<i32>} : memref<8x1024xf32, #tpu.memory_space<vmem>>, vector<1x1024xf32>,
    %22 = arith.index_cast %arg0 : i32 to index
    %c3 = arith.constant 3 : index
    %23 = memref.load %arg1[%22, %c3] : memref<2x8xi32, #tpu.memory_space<smem>>
    %24 = vector.broadcast %23 : i32 to vector<1x1024xi32>
    %25 = arith.cmpi eq, %0, %24 : vector<1x1024xi32>
    %26 = arith.extui %25 : vector<1x1024xi1> to vector<1x1024xi32>
    %27 = arith.sitofp %26 : vector<1x1024xi32> to vector<1x1024xf32>
    %c3_6 = arith.constant 3 : index
    %c0_7 = arith.constant 0 : index
    %28 = vector.load %arg5[%c3_6, %c0_7] : memref<8x1024xf32, #tpu.memory_space<vmem>>, vector<1x1024xf32>
    tpu.vector_store %arg5[%c3_6, %c0_7], %27 {strides = array<i32>} : memref<8x1024xf32, #tpu.memory_space<vmem>>, vector<1x1024xf32>,
    %29 = arith.index_cast %arg0 : i32 to index
    %c4 = arith.constant 4 : index
    %30 = memref.load %arg1[%29, %c4] : memref<2x8xi32, #tpu.memory_space<smem>>
    %31 = vector.broadcast %30 : i32 to vector<1x1024xi32>
    %32 = arith.cmpi eq, %0, %31 : vector<1x1024xi32>
    %33 = arith.extui %32 : vector<1x1024xi1> to vector<1x1024xi32>
    %34 = arith.sitofp %33 : vector<1x1024xi32> to vector<1x1024xf32>
    %c4_8 = arith.constant 4 : index
    %c0_9 = arith.constant 0 : index
    %35 = vector.load %arg5[%c4_8, %c0_9] : memref<8x1024xf32, #tpu.memory_space<vmem>>, vector<1x1024xf32>
    tpu.vector_store %arg5[%c4_8, %c0_9], %34 {strides = array<i32>} : memref<8x1024xf32, #tpu.memory_space<vmem>>, vector<1x1024xf32>,
    %36 = arith.index_cast %arg0 : i32 to index
    %c5 = arith.constant 5 : index
    %37 = memref.load %arg1[%36, %c5] : memref<2x8xi32, #tpu.memory_space<smem>>
    %38 = vector.broadcast %37 : i32 to vector<1x1024xi32>
    %39 = arith.cmpi eq, %0, %38 : vector<1x1024xi32>
    %40 = arith.extui %39 : vector<1x1024xi1> to vector<1x1024xi32>
    %41 = arith.sitofp %40 : vector<1x1024xi32> to vector<1x1024xf32>
    %c5_10 = arith.constant 5 : index
    %c0_11 = arith.constant 0 : index
    %42 = vector.load %arg5[%c5_10, %c0_11] : memref<8x1024xf32, #tpu.memory_space<vmem>>, vector<1x1024xf32>
    tpu.vector_store %arg5[%c5_10, %c0_11], %41 {strides = array<i32>} : memref<8x1024xf32, #tpu.memory_space<vmem>>, vector<1x1024xf32>,
    %43 = arith.index_cast %arg0 : i32 to index
    %c6 = arith.constant 6 : index
    %44 = memref.load %arg1[%43, %c6] : memref<2x8xi32, #tpu.memory_space<smem>>
    %45 = vector.broadcast %44 : i32 to vector<1x1024xi32>
    %46 = arith.cmpi eq, %0, %45 : vector<1x1024xi32>
    %47 = arith.extui %46 : vector<1x1024xi1> to vector<1x1024xi32>
    %48 = arith.sitofp %47 : vector<1x1024xi32> to vector<1x1024xf32>
    %c6_12 = arith.constant 6 : index
    %c0_13 = arith.constant 0 : index
    %49 = vector.load %arg5[%c6_12, %c0_13] : memref<8x1024xf32, #tpu.memory_space<vmem>>, vector<1x1024xf32>
    tpu.vector_store %arg5[%c6_12, %c0_13], %48 {strides = array<i32>} : memref<8x1024xf32, #tpu.memory_space<vmem>>, vector<1x1024xf32>,
    %50 = arith.index_cast %arg0 : i32 to index
    %c7 = arith.constant 7 : index
    %51 = memref.load %arg1[%50, %c7] : memref<2x8xi32, #tpu.memory_space<smem>>
    %52 = vector.broadcast %51 : i32 to vector<1x1024xi32>
    %53 = arith.cmpi eq, %0, %52 : vector<1x1024xi32>
    %54 = arith.extui %53 : vector<1x1024xi1> to vector<1x1024xi32>
    %55 = arith.sitofp %54 : vector<1x1024xi32> to vector<1x1024xf32>
    %c7_14 = arith.constant 7 : index
    %c0_15 = arith.constant 0 : index
    %56 = vector.load %arg5[%c7_14, %c0_15] : memref<8x1024xf32, #tpu.memory_space<vmem>>, vector<1x1024xf32>
    tpu.vector_store %arg5[%c7_14, %c0_15], %55 {strides = array<i32>} : memref<8x1024xf32, #tpu.memory_space<vmem>>, vector<1x1024xf32>,
    %c0_16 = arith.constant 0 : index
    %c0_17 = arith.constant 0 : index
    %57 = vector.load %arg5[%c0_16, %c0_17] : memref<8x1024xf32, #tpu.memory_space<vmem>>, vector<8x1024xf32>
    %c0_18 = arith.constant 0 : index
    %c0_19 = arith.constant 0 : index
    %58 = vector.load %arg2[%c0_18, %c0_19] : memref<1024x128xf32, #tpu.memory_space<vmem>>, vector<1024x128xf32>
    %cst = arith.constant dense<0.000000e+00> : vector<8x128xf32>
    %59 = tpu.matmul %57, %58, %cst {dimension_numbers = #tpu.dot_dimension_numbers<[1], [0], [0], [1], [0, 0, 1, 1], [], []>} : vector<8x1024xf32>, vector<1024x128xf32>, vector<8x128xf32> -> vector<8x128xf32>
    %c0_20 = arith.constant 0 : index
    %c0_21 = arith.constant 0 : index
    %c0_22 = arith.constant 0 : index
    %60 = vector.load %arg3[%c0_20, %c0_21, %c0_22] : memref<1x1x128xf32, #tpu.memory_space<vmem>>, vector<1x1x128xf32>
    %61 = vector.shape_cast %60 : vector<1x1x128xf32> to vector<1x128xf32>
    %62 = vector.broadcast %61 : vector<1x128xf32> to vector<8x128xf32>
    %63 = arith.addf %59, %62 : vector<8x128xf32>
    %c0_23 = arith.constant 0 : index
    %c0_24 = arith.constant 0 : index
    %c0_25 = arith.constant 0 : index
    %64 = vector.load %arg4[%c0_23, %c0_24, %c0_25] : memref<1x8x128xf32, #tpu.memory_space<vmem>>, vector<1x8x128xf32>
    %65 = vector.shape_cast %64 : vector<1x8x128xf32> to vector<8x128xf32>
    %66 = vector.shape_cast %63 : vector<8x128xf32> to vector<1x8x128xf32>
    tpu.vector_store %arg4[%c0_23, %c0_24, %c0_25], %66 {strides = array<i32>} : memref<1x8x128xf32, #tpu.memory_space<vmem>>, vector<1x8x128xf32>,
    return
  }
  func.func @transform_0(%arg0: i32, %arg1: memref<2x8xi32, #tpu.memory_space<smem>>) -> (i32, i32) {
    %c0_i32 = arith.constant 0 : i32
    %c0_i32_0 = arith.constant 0 : i32
    %c0_i32_1 = arith.constant 0 : i32
    return %c0_i32, %c0_i32_0 : i32, i32
  }
  func.func @transform_1(%arg0: i32, %arg1: memref<2x8xi32, #tpu.memory_space<smem>>) -> (i32, i32, i32) {
    %c0_i32 = arith.constant 0 : i32
    %c0_i32_0 = arith.constant 0 : i32
    %c0_i32_1 = arith.constant 0 : i32
    return %arg0, %c0_i32, %c0_i32_0 : i32, i32, i32
  }
  func.func @transform_2(%arg0: i32, %arg1: memref<2x8xi32, #tpu.memory_space<smem>>) -> (i32, i32, i32) {
    %c0_i32 = arith.constant 0 : i32
    %c0_i32_0 = arith.constant 0 : i32
    %c0_i32_1 = arith.constant 0 : i32
    return %arg0, %c0_i32, %c0_i32_0 : i32, i32, i32
  }
}

</mosaic_0001>

<llo_original>
// kernel: tpu_custom_call.1
$region0: #{tpu_custom_call.1}
  #allocation0 [shape = 'u32[]', space=smem, size = 0x4, offset = 0x4, fixed_abs, tag = 'smem constant byte address 0x4 - core index']
  #allocation1 [shape = 'u32[144,128]{1,0:T(1,128)}', space=vmem, size = 0x12000, scoped, tag = 'internal scratch']
  #allocation2 [shape = 'f32[8,1024]{1,0:T(8,128)}', space=vmem, size = 0x8000, scoped, tag = 'scratch operand']
  #allocation3 [shape = 's32[1]{0}', space=sflag, size = 0x4, scoped, tag = 'scoped memory for tpu_custom_call.1']
  #allocation4 [shape = 'u8[1024]{0}', space=smem, size = 0x400, scoped, tag = 'prefetched SMEM operand 0']
  %s0 = inlined_call_operand.hbm [shape: s32[2,8], index: 0, kind: input, shape index: {}]
  %s1 = inlined_call_operand.hbm [shape: f32[1024,128], index: 1, kind: input, shape index: {}]
  %s2 = inlined_call_operand.hbm [shape: f32[512,1,128], index: 2, kind: input, shape index: {}]
  %s3 = inlined_call_operand.hbm [shape: f32[2,8,128], index: 3, kind: output, shape index: {}]
  %s4 = sld [smem:[#allocation0]]
  $region49: #{tpu_custom_call.1} parent=0
    _
  %s6 = ssub.s32 1, %s4
  %s7 = scalar_select 0, %s6, %s4
  %9 = dma.hbm_to_smem %s0, 32, [#allocation4], [#allocation3]
  %10 = dma.done [#allocation3], 32
  %11 = sfence
  $region1: #{tpu_custom_call.1} parent=0
    #allocation5 [shape = 'u8[524288]{0}', space=vmem, size = 0x80000, scoped, tag = 'input window, operand 1, single buffered']
    #allocation6 [shape = 's32[2]{0}', space=sflag, size = 0x8, scoped, tag = 'scoped memory for tpu_custom_call.1']
    #allocation7 [shape = 's32[2]{0}', space=sflag, size = 0x8, scoped, tag = 'scoped memory for tpu_custom_call.1']
    #allocation8 [shape = 'u8[1024]{0}', space=vmem, size = 0x400, scoped, tag = 'input window, operand 2']
    #allocation9 [shape = 's32[2]{0}', space=sflag, size = 0x8, scoped, tag = 'scoped memory for tpu_custom_call.1']
    #allocation10 [shape = 'u8[8192]{0}', space=vmem, size = 0x2000, scoped, tag = 'output window, operand 0']
    %12 = vsyncpa [#allocation6], 0
    %13 = vsyncpa [#allocation9], 0
    %s14 = scalar_lea.sflag [#allocation9], 1
    %15 = vsyncpa %s14, 0
    %16 = vsyncpa [#allocation7], 0
    %s17 = scalar_lea.sflag [#allocation7], 1
    %18 = vsyncpa %s17, 0
    loop: start=0, step=1, limit=4
    $region2: #{tpu_custom_call.1} parent=1 // loop_pre_header
      _
    $region3: #{tpu_custom_call.1} parent=1 // loop_header
      %s20 = sphi 0, %s24
      %p21 = scmp.ge.s32.totalorder %s20, 4
      %s28 = sphi 0, %s28
      %s30 = sphi 0, %s28
      %s31 = sphi 0, %s30
      %s45 = sphi 0, %s31
      %s51 = sphi 0, %s53
      %s54 = sphi 0, %s51
      %s55 = sphi 0, %s54
      %s71 = sphi 0, %s55
      %s77 = sphi 0, %s79
      %s80 = sphi 0, %s77
      %s81 = sphi 0, %s80
      %s97 = sphi 0, %s81
    $region4: #{tpu_custom_call.1} parent=1 // loop_header_branch
      %23 = sbr.rel (%p21) target = $region8
    $region5: #{tpu_custom_call.1} parent=1 // loop_body
      %s25 = ssub.s32 %s20, 1
      %s26 = ssub.s32 %s20, 2
      %s27 = sadd.s32 %s20, 1
      %s29 = sadd.s32 %s28, 1
      %p32 = scmp.eq.s32.totalorder %s20, 1
      %p33 = scmp.ne.s32.totalorder %s28, %s30
      %p34 = scmp.eq.s32.totalorder %s20, 0
      %p35 = por %p33, %p34
      %p36 = scmp.ne.s32.totalorder %s28, %s30
      %p37 = scmp.eq.s32.totalorder %s25, 1
      %p38 = por %p36, %p37
      %p39 = scmp.ne.s32.totalorder %s30, %s31
      %p40 = scmp.eq.s32.totalorder %s25, 0
      %p41 = por %p39, %p40
      %p42 = scmp.ne.s32.totalorder %s30, %s31
      %p43 = scmp.eq.s32.totalorder %s26, 1
      %p44 = por %p42, %p43
      %p46 = scmp.ne.s32.totalorder %s31, %s45
      %p47 = scmp.eq.s32.totalorder %s26, 0
      %p48 = por %p46, %p47
      %s49 = ssub.s32 %s20, %s27
      %p50 = scmp.eq.s32.totalorder %s49, 0
      %s52 = sadd.s32 %s51, 1
      %s53 = scalar_select %p50, %s51, %s52
      %p56 = pneg %p50
      %p57 = scmp.eq.s32.totalorder %s20, 1
      %p58 = por %p56, %p57
      %p59 = scmp.ne.s32.totalorder %s51, %s54
      %p60 = scmp.eq.s32.totalorder %s20, 0
      %p61 = por %p59, %p60
      %p62 = scmp.ne.s32.totalorder %s51, %s54
      %p63 = scmp.eq.s32.totalorder %s25, 1
      %p64 = por %p62, %p63
      %p65 = scmp.ne.s32.totalorder %s54, %s55
      %p66 = scmp.eq.s32.totalorder %s25, 0
      %p67 = por %p65, %p66
      %p68 = scmp.ne.s32.totalorder %s54, %s55
      %p69 = scmp.eq.s32.totalorder %s26, 1
      %p70 = por %p68, %p69
      %p72 = scmp.ne.s32.totalorder %s55, %s71
      %p73 = scmp.eq.s32.totalorder %s26, 0
      %p74 = por %p72, %p73
      %s75 = ssub.s32 %s20, %s27
      %p76 = scmp.eq.s32.totalorder %s75, 0
      %s78 = sadd.s32 %s77, 1
      %s79 = scalar_select %p76, %s77, %s78
      %p82 = pneg %p76
      %p83 = scmp.eq.s32.totalorder %s20, 1
      %p84 = por %p82, %p83
      %p85 = scmp.ne.s32.totalorder %s77, %s80
      %p86 = scmp.eq.s32.totalorder %s20, 0
      %p87 = por %p85, %p86
      %p88 = scmp.ne.s32.totalorder %s77, %s80
      %p89 = scmp.eq.s32.totalorder %s25, 1
      %p90 = por %p88, %p89
      %p91 = scmp.ne.s32.totalorder %s80, %s81
      %p92 = scmp.eq.s32.totalorder %s25, 0
      %p93 = por %p91, %p92
      %p94 = scmp.ne.s32.totalorder %s80, %s81
      %p95 = scmp.eq.s32.totalorder %s26, 1
      %p96 = por %p94, %p95
      %p98 = scmp.ne.s32.totalorder %s81, %s97
      %p99 = scmp.eq.s32.totalorder %s26, 0
      %p100 = por %p98, %p99
      %p101 = scmp.le.s32.totalorder 1, %s20
      %p102 = scmp.lt.s32.totalorder %s20, 3
      %p103 = pnand %p101, %p102
      %p104 = pneg %p103
      // Predicated region
      $region9: #{tpu_custom_call.1} parent=5 // pred_check
        _
      $region10: #{tpu_custom_call.1} parent=5 // pred_check_branch
        %106 = sbr.rel (%p103) target = $region12
      $region11: #{tpu_custom_call.1} parent=5 // pred_region
        %s107 = ssub.s32 %s20, 1
        // Predicated region
        $region13: #{tpu_custom_call.1} parent=11 // pred_check
          %p108 = pneg %p41
        $region14: #{tpu_custom_call.1} parent=11 // pred_check_branch
          %110 = sbr.rel (%p108) target = $region16
        $region15: #{tpu_custom_call.1} parent=11 // pred_region
          %s112 = ssub.s32 16384, 16384
          %113 = vsyncadd [#allocation6], %s112
          %s114 = sshll.u32 [#allocation5], 4
          %s115 = int_to_ptr.vmem [resolvable:$true] %s114
          %120 = dma.hbm_to_vmem [thread:$0]  %s1, 16384, %s115, [#allocation6], 128, 128, 8
        $region16: #{tpu_custom_call.1} parent=11 // pred_fallthru
          _
      $region12: #{tpu_custom_call.1} parent=5 // pred_fallthru
        _
      %p121 = scmp.lt.s32.totalorder %s20, 2
      // Predicated region
      $region17: #{tpu_custom_call.1} parent=5 // pred_check
        %p122 = pneg %p121
      $region18: #{tpu_custom_call.1} parent=5 // pred_check_branch
        %124 = sbr.rel (%p122) target = $region20
      $region19: #{tpu_custom_call.1} parent=5 // pred_region
        // Predicated region
        $region21: #{tpu_custom_call.1} parent=19 // pred_check
          %p125 = pneg %p61
        $region22: #{tpu_custom_call.1} parent=19 // pred_check_branch
          %127 = sbr.rel (%p125) target = $region24
        $region23: #{tpu_custom_call.1} parent=19 // pred_region
          %s128 = sand.u32 %s51, 1
          %s129 = scalar_lea.sflag [#allocation9], %s128
          %s130 = sand.u32 %s51, 1
          %s131 = scalar_lea.vmem [#allocation8], %s130
          %s133 = ssub.s32 16, 16
          %134 = vsyncadd %s129, %s133
          %s135 = smul.addr %s20, 16
          %s136 = scalar_lea.hbm %s2, %s135
          %s138 = sshll.u32 %s131, 4
          %s139 = int_to_ptr.vmem [resolvable:$true] %s138
          %141 = dma.hbm_to_vmem [thread:$0]  %s136, 16, %s139, %s129
        $region24: #{tpu_custom_call.1} parent=19 // pred_fallthru
          _
      $region20: #{tpu_custom_call.1} parent=5 // pred_fallthru
        _
      %p142 = scmp.le.s32.totalorder 1, %s20
      %p143 = scmp.lt.s32.totalorder %s20, 3
      %p144 = pnand %p142, %p143
      %p145 = pneg %p144
      // Predicated region
      $region25: #{tpu_custom_call.1} parent=5 // pred_check
        _
      $region26: #{tpu_custom_call.1} parent=5 // pred_check_branch
        %147 = sbr.rel (%p144) target = $region28
      $region27: #{tpu_custom_call.1} parent=5 // pred_region
        %s148 = ssub.s32 %s20, 1
        // Predicated region
        $region29: #{tpu_custom_call.1} parent=27 // pred_check
          %p149 = pneg %p41
        $region30: #{tpu_custom_call.1} parent=27 // pred_check_branch
          %151 = sbr.rel (%p149) target = $region32
        $region31: #{tpu_custom_call.1} parent=27 // pred_region
          %152 = dma.done [#allocation6], 16384
        $region32: #{tpu_custom_call.1} parent=27 // pred_fallthru
          _
        %s153 = sand.u32 %s54, 1
        %s154 = scalar_lea.sflag [#allocation9], %s153
        %s155 = sand.u32 %s54, 1
        %s156 = scalar_lea.vmem [#allocation8], %s155
        // Predicated region
        $region33: #{tpu_custom_call.1} parent=27 // pred_check
          %p157 = pneg %p67
        $region34: #{tpu_custom_call.1} parent=27 // pred_check_branch
          %159 = sbr.rel (%p157) target = $region36
        $region35: #{tpu_custom_call.1} parent=27 // pred_region
          %160 = dma.done %s154, 16
        $region36: #{tpu_custom_call.1} parent=27 // pred_fallthru
          _
        %p161 = pneg %p41
        %p162 = pneg %p38
        %s163 = sand.u32 %s54, 1
        %s164 = scalar_lea.sflag [#allocation9], %s163
        %s165 = sand.u32 %s54, 1
        %s166 = scalar_lea.vmem [#allocation8], %s165
        %p167 = pneg %p67
        %p168 = pneg %p64
        %p169 = pneg %p93
        %p170 = pneg %p90
        %s171 = sand.u32 %s80, 1
        %s172 = scalar_lea.sflag [#allocation7], %s171
        %s173 = sand.u32 %s80, 1
        %s174 = smul.addr %s173, 8
        %s175 = scalar_lea.vmem [#allocation10], %s174
        %v176 = vlaneseq
        %v177 = vand.u32 %v176, 127
        %v178 = vadd.s32 %v177, 128
        %v179 = vadd.s32 %v177, 256
        %v180 = vadd.s32 %v177, 384
        %v181 = vadd.s32 %v177, 512
        %v182 = vadd.s32 %v177, 640
        %v183 = vadd.s32 %v177, 768
        %v184 = vadd.s32 %v177, 896
        %s185 = smul.u32 %s25, 128
        %s186 = sld [smem:[#allocation4 + %s185]]
        %v187 = vstv %s186
        %vm188 = vcmp.eq.s32.totalorder %v177, %v187
        %vm189 = vcmp.eq.s32.totalorder %v178, %v187
        %vm190 = vcmp.eq.s32.totalorder %v179, %v187
        %vm191 = vcmp.eq.s32.totalorder %v180, %v187
        %vm192 = vcmp.eq.s32.totalorder %v181, %v187
        %vm193 = vcmp.eq.s32.totalorder %v182, %v187
        %vm194 = vcmp.eq.s32.totalorder %v183, %v187
        %vm195 = vcmp.eq.s32.totalorder %v184, %v187
        %v196 = vsel %vm188, 1, 0
        %v197 = vsel %vm189, 1, 0
        %v198 = vsel %vm190, 1, 0
        %v199 = vsel %vm191, 1, 0
        %v200 = vsel %vm192, 1, 0
        %v201 = vsel %vm193, 1, 0
        %v202 = vsel %vm194, 1, 0
        %v203 = vsel %vm195, 1, 0
        %v204 = vcvt.s32.f32 %v196
        %v205 = vcvt.s32.f32 %v197
        %v206 = vcvt.s32.f32 %v198
        %v207 = vcvt.s32.f32 %v199
        %v208 = vcvt.s32.f32 %v200
        %v209 = vcvt.s32.f32 %v201
        %v210 = vcvt.s32.f32 %v202
        %v211 = vcvt.s32.f32 %v203
        %v220 = vcombine.low %v204, %v205
        %v221 = vcombine.low %v206, %v207
        %v222 = vcombine.low %v208, %v209
        %v223 = vcombine.low %v210, %v211
        %v225 = vunpack.c.l.s4 1966171168
        %v226 = vunpack.c.0.s8 %v225
        %v227 = vlaneseq
        %v228 = vshrl.u32 %v227, 7
        %v229 = vsub.s32 %v226, %v228
        %v230 = vrot.slane %v220, %v229
        %v232 = vunpack.c.l.s4 1966171168
        %v233 = vunpack.c.0.s8 %v232
        %v234 = vlaneseq
        %v235 = vshrl.u32 %v234, 7
        %v236 = vsub.s32 %v233, %v235
        %v237 = vrot.slane %v221, %v236
        %v239 = vunpack.c.l.s4 1966171168
        %v240 = vunpack.c.0.s8 %v239
        %v241 = vlaneseq
        %v242 = vshrl.u32 %v241, 7
        %v243 = vsub.s32 %v240, %v242
        %v244 = vrot.slane %v222, %v243
        %v246 = vunpack.c.l.s4 1966171168
        %v247 = vunpack.c.0.s8 %v246
        %v248 = vlaneseq
        %v249 = vshrl.u32 %v248, 7
        %v250 = vsub.s32 %v247, %v249
        %v251 = vrot.slane %v223, %v250
        %v252 = vcombine.low %v230, %v237
        %v253 = vcombine.low %v244, %v251
        %v255 = vunpack.c.l.s4 1966171168
        %v256 = vunpack.c.0.s8 %v255
        %v257 = vlaneseq
        %v258 = vshrl.u32 %v257, 7
        %v259 = vsub.s32 %v256, %v258
        %v260 = vrot.slane %v252, %v259
        %v262 = vunpack.c.l.s4 1966171168
        %v263 = vunpack.c.0.s8 %v262
        %v264 = vlaneseq
        %v265 = vshrl.u32 %v264, 7
        %v266 = vsub.s32 %v263, %v265
        %v267 = vrot.slane %v253, %v266
        %v268 = vcombine.low %v260, %v267
        %270 = vst [vmem:[#allocation2] ss:$8 sm:$0xf] %v268
        %271 = vst [vmem:[#allocation2] ss:$8 sm:$0xf0] %v268
        %s272 = sadd.s32 %s185, 1
        %s273 = sld [smem:[#allocation4 + %s272]]
        %v274 = vstv %s273
        %vm275 = vcmp.eq.s32.totalorder %v177, %v274
        %vm276 = vcmp.eq.s32.totalorder %v178, %v274
        %vm277 = vcmp.eq.s32.totalorder %v179, %v274
        %vm278 = vcmp.eq.s32.totalorder %v180, %v274
        %vm279 = vcmp.eq.s32.totalorder %v181, %v274
        %vm280 = vcmp.eq.s32.totalorder %v182, %v274
        %vm281 = vcmp.eq.s32.totalorder %v183, %v274
        %vm282 = vcmp.eq.s32.totalorder %v184, %v274
        %v283 = vsel %vm275, 1, 0
        %v284 = vsel %vm276, 1, 0
        %v285 = vsel %vm277, 1, 0
        %v286 = vsel %vm278, 1, 0
        %v287 = vsel %vm279, 1, 0
        %v288 = vsel %vm280, 1, 0
        %v289 = vsel %vm281, 1, 0
        %v290 = vsel %vm282, 1, 0
        %v291 = vcvt.s32.f32 %v283
        %v292 = vcvt.s32.f32 %v284
        %v293 = vcvt.s32.f32 %v285
        %v294 = vcvt.s32.f32 %v286
        %v295 = vcvt.s32.f32 %v287
        %v296 = vcvt.s32.f32 %v288
        %v297 = vcvt.s32.f32 %v289
        %v298 = vcvt.s32.f32 %v290
        %v307 = vcombine.low %v291, %v292
        %v308 = vcombine.low %v293, %v294
        %v309 = vcombine.low %v295, %v296
        %v310 = vcombine.low %v297, %v298
        %v312 = vunpack.c.l.s4 1966171168
        %v313 = vunpack.c.0.s8 %v312
        %v314 = vlaneseq
        %v315 = vshrl.u32 %v314, 7
        %v316 = vsub.s32 %v313, %v315
        %v317 = vrot.slane %v307, %v316
        %v319 = vunpack.c.l.s4 1966171168
        %v320 = vunpack.c.0.s8 %v319
        %v321 = vlaneseq
        %v322 = vshrl.u32 %v321, 7
        %v323 = vsub.s32 %v320, %v322
        %v324 = vrot.slane %v308, %v323
        %v326 = vunpack.c.l.s4 1966171168
        %v327 = vunpack.c.0.s8 %v326
        %v328 = vlaneseq
        %v329 = vshrl.u32 %v328, 7
        %v330 = vsub.s32 %v327, %v329
        %v331 = vrot.slane %v309, %v330
        %v333 = vunpack.c.l.s4 1966171168
        %v334 = vunpack.c.0.s8 %v333
        %v335 = vlaneseq
        %v336 = vshrl.u32 %v335, 7
        %v337 = vsub.s32 %v334, %v336
        %v338 = vrot.slane %v310, %v337
        %v339 = vcombine.low %v317, %v324
        %v340 = vcombine.low %v331, %v338
        %v342 = vunpack.c.l.s4 1966171168
        %v343 = vunpack.c.0.s8 %v342
        %v344 = vlaneseq
        %v345 = vshrl.u32 %v344, 7
        %v346 = vsub.s32 %v343, %v345
        %v347 = vrot.slane %v339, %v346
        %v349 = vunpack.c.l.s4 1966171168
        %v350 = vunpack.c.0.s8 %v349
        %v351 = vlaneseq
        %v352 = vshrl.u32 %v351, 7
        %v353 = vsub.s32 %v350, %v352
        %v354 = vrot.slane %v340, %v353
        %v355 = vcombine.low %v347, %v354
        %s357 = scalar_lea.vmem [#allocation2], 1
        %358 = vst [vmem:[%s357] ss:$8 sm:$0xf] %v355
        %359 = vst [vmem:[%s357] ss:$8 sm:$0xf0] %v355
        %s360 = sadd.s32 %s185, 2
        %s361 = sld [smem:[#allocation4 + %s360]]
        %v362 = vstv %s361
        %vm363 = vcmp.eq.s32.totalorder %v177, %v362
        %vm364 = vcmp.eq.s32.totalorder %v178, %v362
        %vm365 = vcmp.eq.s32.totalorder %v179, %v362
        %vm366 = vcmp.eq.s32.totalorder %v180, %v362
        %vm367 = vcmp.eq.s32.totalorder %v181, %v362
        %vm368 = vcmp.eq.s32.totalorder %v182, %v362
        %vm369 = vcmp.eq.s32.totalorder %v183, %v362
        %vm370 = vcmp.eq.s32.totalorder %v184, %v362
        %v371 = vsel %vm363, 1, 0
        %v372 = vsel %vm364, 1, 0
        %v373 = vsel %vm365, 1, 0
        %v374 = vsel %vm366, 1, 0
        %v375 = vsel %vm367, 1, 0
        %v376 = vsel %vm368, 1, 0
        %v377 = vsel %vm369, 1, 0
        %v378 = vsel %vm370, 1, 0
        %v379 = vcvt.s32.f32 %v371
        %v380 = vcvt.s32.f32 %v372
        %v381 = vcvt.s32.f32 %v373
        %v382 = vcvt.s32.f32 %v374
        %v383 = vcvt.s32.f32 %v375
        %v384 = vcvt.s32.f32 %v376
        %v385 = vcvt.s32.f32 %v377
        %v386 = vcvt.s32.f32 %v378
        %v395 = vcombine.low %v379, %v380
        %v396 = vcombine.low %v381, %v382
        %v397 = vcombine.low %v383, %v384
        %v398 = vcombine.low %v385, %v386
        %v400 = vunpack.c.l.s4 1966171168
        %v401 = vunpack.c.0.s8 %v400
        %v402 = vlaneseq
        %v403 = vshrl.u32 %v402, 7
        %v404 = vsub.s32 %v401, %v403
        %v405 = vrot.slane %v395, %v404
        %v407 = vunpack.c.l.s4 1966171168
        %v408 = vunpack.c.0.s8 %v407
        %v409 = vlaneseq
        %v410 = vshrl.u32 %v409, 7
        %v411 = vsub.s32 %v408, %v410
        %v412 = vrot.slane %v396, %v411
        %v414 = vunpack.c.l.s4 1966171168
        %v415 = vunpack.c.0.s8 %v414
        %v416 = vlaneseq
        %v417 = vshrl.u32 %v416, 7
        %v418 = vsub.s32 %v415, %v417
        %v419 = vrot.slane %v397, %v418
        %v421 = vunpack.c.l.s4 1966171168
        %v422 = vunpack.c.0.s8 %v421
        %v423 = vlaneseq
        %v424 = vshrl.u32 %v423, 7
        %v425 = vsub.s32 %v422, %v424
        %v426 = vrot.slane %v398, %v425
        %v427 = vcombine.low %v405, %v412
        %v428 = vcombine.low %v419, %v426
        %v430 = vunpack.c.l.s4 1966171168
        %v431 = vunpack.c.0.s8 %v430
        %v432 = vlaneseq
        %v433 = vshrl.u32 %v432, 7
        %v434 = vsub.s32 %v431, %v433
        %v435 = vrot.slane %v427, %v434
        %v437 = vunpack.c.l.s4 1966171168
        %v438 = vunpack.c.0.s8 %v437
        %v439 = vlaneseq
        %v440 = vshrl.u32 %v439, 7
        %v441 = vsub.s32 %v438, %v440
        %v442 = vrot.slane %v428, %v441
        %v443 = vcombine.low %v435, %v442
        %s445 = scalar_lea.vmem [#allocation2], 2
        %446 = vst [vmem:[%s445] ss:$8 sm:$0xf] %v443
        %447 = vst [vmem:[%s445] ss:$8 sm:$0xf0] %v443
        %s448 = sadd.s32 %s185, 3
        %s449 = sld [smem:[#allocation4 + %s448]]
        %v450 = vstv %s449
        %vm451 = vcmp.eq.s32.totalorder %v177, %v450
        %vm452 = vcmp.eq.s32.totalorder %v178, %v450
        %vm453 = vcmp.eq.s32.totalorder %v179, %v450
        %vm454 = vcmp.eq.s32.totalorder %v180, %v450
        %vm455 = vcmp.eq.s32.totalorder %v181, %v450
        %vm456 = vcmp.eq.s32.totalorder %v182, %v450
        %vm457 = vcmp.eq.s32.totalorder %v183, %v450
        %vm458 = vcmp.eq.s32.totalorder %v184, %v450
        %v459 = vsel %vm451, 1, 0
        %v460 = vsel %vm452, 1, 0
        %v461 = vsel %vm453, 1, 0
        %v462 = vsel %vm454, 1, 0
        %v463 = vsel %vm455, 1, 0
        %v464 = vsel %vm456, 1, 0
        %v465 = vsel %vm457, 1, 0
        %v466 = vsel %vm458, 1, 0
        %v467 = vcvt.s32.f32 %v459
        %v468 = vcvt.s32.f32 %v460
        %v469 = vcvt.s32.f32 %v461
        %v470 = vcvt.s32.f32 %v462
        %v471 = vcvt.s32.f32 %v463
        %v472 = vcvt.s32.f32 %v464
        %v473 = vcvt.s32.f32 %v465
        %v474 = vcvt.s32.f32 %v466
        %v483 = vcombine.low %v467, %v468
        %v484 = vcombine.low %v469, %v470
        %v485 = vcombine.low %v471, %v472
        %v486 = vcombine.low %v473, %v474
        %v488 = vunpack.c.l.s4 1966171168
        %v489 = vunpack.c.0.s8 %v488
        %v490 = vlaneseq
        %v491 = vshrl.u32 %v490, 7
        %v492 = vsub.s32 %v489, %v491
        %v493 = vrot.slane %v483, %v492
        %v495 = vunpack.c.l.s4 1966171168
        %v496 = vunpack.c.0.s8 %v495
        %v497 = vlaneseq
        %v498 = vshrl.u32 %v497, 7
        %v499 = vsub.s32 %v496, %v498
        %v500 = vrot.slane %v484, %v499
        %v502 = vunpack.c.l.s4 1966171168
        %v503 = vunpack.c.0.s8 %v502
        %v504 = vlaneseq
        %v505 = vshrl.u32 %v504, 7
        %v506 = vsub.s32 %v503, %v505
        %v507 = vrot.slane %v485, %v506
        %v509 = vunpack.c.l.s4 1966171168
        %v510 = vunpack.c.0.s8 %v509
        %v511 = vlaneseq
        %v512 = vshrl.u32 %v511, 7
        %v513 = vsub.s32 %v510, %v512
        %v514 = vrot.slane %v486, %v513
        %v515 = vcombine.low %v493, %v500
        %v516 = vcombine.low %v507, %v514
        %v518 = vunpack.c.l.s4 1966171168
        %v519 = vunpack.c.0.s8 %v518
        %v520 = vlaneseq
        %v521 = vshrl.u32 %v520, 7
        %v522 = vsub.s32 %v519, %v521
        %v523 = vrot.slane %v515, %v522
        %v525 = vunpack.c.l.s4 1966171168
        %v526 = vunpack.c.0.s8 %v525
        %v527 = vlaneseq
        %v528 = vshrl.u32 %v527, 7
        %v529 = vsub.s32 %v526, %v528
        %v530 = vrot.slane %v516, %v529
        %v531 = vcombine.low %v523, %v530
        %s533 = scalar_lea.vmem [#allocation2], 3
        %534 = vst [vmem:[%s533] ss:$8 sm:$0xf] %v531
        %535 = vst [vmem:[%s533] ss:$8 sm:$0xf0] %v531
        %s536 = sadd.s32 %s185, 4
        %s537 = sld [smem:[#allocation4 + %s536]]
        %v538 = vstv %s537
        %vm539 = vcmp.eq.s32.totalorder %v177, %v538
        %vm540 = vcmp.eq.s32.totalorder %v178, %v538
        %vm541 = vcmp.eq.s32.totalorder %v179, %v538
        %vm542 = vcmp.eq.s32.totalorder %v180, %v538
        %vm543 = vcmp.eq.s32.totalorder %v181, %v538
        %vm544 = vcmp.eq.s32.totalorder %v182, %v538
        %vm545 = vcmp.eq.s32.totalorder %v183, %v538
        %vm546 = vcmp.eq.s32.totalorder %v184, %v538
        %v547 = vsel %vm539, 1, 0
        %v548 = vsel %vm540, 1, 0
        %v549 = vsel %vm541, 1, 0
        %v550 = vsel %vm542, 1, 0
        %v551 = vsel %vm543, 1, 0
        %v552 = vsel %vm544, 1, 0
        %v553 = vsel %vm545, 1, 0
        %v554 = vsel %vm546, 1, 0
        %v555 = vcvt.s32.f32 %v547
        %v556 = vcvt.s32.f32 %v548
        %v557 = vcvt.s32.f32 %v549
        %v558 = vcvt.s32.f32 %v550
        %v559 = vcvt.s32.f32 %v551
        %v560 = vcvt.s32.f32 %v552
        %v561 = vcvt.s32.f32 %v553
        %v562 = vcvt.s32.f32 %v554
        %v571 = vcombine.low %v555, %v556
        %v572 = vcombine.low %v557, %v558
        %v573 = vcombine.low %v559, %v560
        %v574 = vcombine.low %v561, %v562
        %v576 = vunpack.c.l.s4 1966171168
        %v577 = vunpack.c.0.s8 %v576
        %v578 = vlaneseq
        %v579 = vshrl.u32 %v578, 7
        %v580 = vsub.s32 %v577, %v579
        %v581 = vrot.slane %v571, %v580
        %v583 = vunpack.c.l.s4 1966171168
        %v584 = vunpack.c.0.s8 %v583
        %v585 = vlaneseq
        %v586 = vshrl.u32 %v585, 7
        %v587 = vsub.s32 %v584, %v586
        %v588 = vrot.slane %v572, %v587
        %v590 = vunpack.c.l.s4 1966171168
        %v591 = vunpack.c.0.s8 %v590
        %v592 = vlaneseq
        %v593 = vshrl.u32 %v592, 7
        %v594 = vsub.s32 %v591, %v593
        %v595 = vrot.slane %v573, %v594
        %v597 = vunpack.c.l.s4 1966171168
        %v598 = vunpack.c.0.s8 %v597
        %v599 = vlaneseq
        %v600 = vshrl.u32 %v599, 7
        %v601 = vsub.s32 %v598, %v600
        %v602 = vrot.slane %v574, %v601
        %v603 = vcombine.low %v581, %v588
        %v604 = vcombine.low %v595, %v602
        %v606 = vunpack.c.l.s4 1966171168
        %v607 = vunpack.c.0.s8 %v606
        %v608 = vlaneseq
        %v609 = vshrl.u32 %v608, 7
        %v610 = vsub.s32 %v607, %v609
        %v611 = vrot.slane %v603, %v610
        %v613 = vunpack.c.l.s4 1966171168
        %v614 = vunpack.c.0.s8 %v613
        %v615 = vlaneseq
        %v616 = vshrl.u32 %v615, 7
        %v617 = vsub.s32 %v614, %v616
        %v618 = vrot.slane %v604, %v617
        %v619 = vcombine.low %v611, %v618
        %s621 = scalar_lea.vmem [#allocation2], 4
        %622 = vst [vmem:[%s621] ss:$8 sm:$0xf] %v619
        %623 = vst [vmem:[%s621] ss:$8 sm:$0xf0] %v619
        %s624 = sadd.s32 %s185, 5
        %s625 = sld [smem:[#allocation4 + %s624]]
        %v626 = vstv %s625
        %vm627 = vcmp.eq.s32.totalorder %v177, %v626
        %vm628 = vcmp.eq.s32.totalorder %v178, %v626
        %vm629 = vcmp.eq.s32.totalorder %v179, %v626
        %vm630 = vcmp.eq.s32.totalorder %v180, %v626
        %vm631 = vcmp.eq.s32.totalorder %v181, %v626
        %vm632 = vcmp.eq.s32.totalorder %v182, %v626
        %vm633 = vcmp.eq.s32.totalorder %v183, %v626
        %vm634 = vcmp.eq.s32.totalorder %v184, %v626
        %v635 = vsel %vm627, 1, 0
        %v636 = vsel %vm628, 1, 0
        %v637 = vsel %vm629, 1, 0
        %v638 = vsel %vm630, 1, 0
        %v639 = vsel %vm631, 1, 0
        %v640 = vsel %vm632, 1, 0
        %v641 = vsel %vm633, 1, 0
        %v642 = vsel %vm634, 1, 0
        %v643 = vcvt.s32.f32 %v635
        %v644 = vcvt.s32.f32 %v636
        %v645 = vcvt.s32.f32 %v637
        %v646 = vcvt.s32.f32 %v638
        %v647 = vcvt.s32.f32 %v639
        %v648 = vcvt.s32.f32 %v640
        %v649 = vcvt.s32.f32 %v641
        %v650 = vcvt.s32.f32 %v642
        %v659 = vcombine.low %v643, %v644
        %v660 = vcombine.low %v645, %v646
        %v661 = vcombine.low %v647, %v648
        %v662 = vcombine.low %v649, %v650
        %v664 = vunpack.c.l.s4 1966171168
        %v665 = vunpack.c.0.s8 %v664
        %v666 = vlaneseq
        %v667 = vshrl.u32 %v666, 7
        %v668 = vsub.s32 %v665, %v667
        %v669 = vrot.slane %v659, %v668
        %v671 = vunpack.c.l.s4 1966171168
        %v672 = vunpack.c.0.s8 %v671
        %v673 = vlaneseq
        %v674 = vshrl.u32 %v673, 7
        %v675 = vsub.s32 %v672, %v674
        %v676 = vrot.slane %v660, %v675
        %v678 = vunpack.c.l.s4 1966171168
        %v679 = vunpack.c.0.s8 %v678
        %v680 = vlaneseq
        %v681 = vshrl.u32 %v680, 7
        %v682 = vsub.s32 %v679, %v681
        %v683 = vrot.slane %v661, %v682
        %v685 = vunpack.c.l.s4 1966171168
        %v686 = vunpack.c.0.s8 %v685
        %v687 = vlaneseq
        %v688 = vshrl.u32 %v687, 7
        %v689 = vsub.s32 %v686, %v688
        %v690 = vrot.slane %v662, %v689
        %v691 = vcombine.low %v669, %v676
        %v692 = vcombine.low %v683, %v690
        %v694 = vunpack.c.l.s4 1966171168
        %v695 = vunpack.c.0.s8 %v694
        %v696 = vlaneseq
        %v697 = vshrl.u32 %v696, 7
        %v698 = vsub.s32 %v695, %v697
        %v699 = vrot.slane %v691, %v698
        %v701 = vunpack.c.l.s4 1966171168
        %v702 = vunpack.c.0.s8 %v701
        %v703 = vlaneseq
        %v704 = vshrl.u32 %v703, 7
        %v705 = vsub.s32 %v702, %v704
        %v706 = vrot.slane %v692, %v705
        %v707 = vcombine.low %v699, %v706
        %s709 = scalar_lea.vmem [#allocation2], 5
        %710 = vst [vmem:[%s709] ss:$8 sm:$0xf] %v707
        %711 = vst [vmem:[%s709] ss:$8 sm:$0xf0] %v707
        %s712 = sadd.s32 %s185, 6
        %s713 = sld [smem:[#allocation4 + %s712]]
        %v714 = vstv %s713
        %vm715 = vcmp.eq.s32.totalorder %v177, %v714
        %vm716 = vcmp.eq.s32.totalorder %v178, %v714
        %vm717 = vcmp.eq.s32.totalorder %v179, %v714
        %vm718 = vcmp.eq.s32.totalorder %v180, %v714
        %vm719 = vcmp.eq.s32.totalorder %v181, %v714
        %vm720 = vcmp.eq.s32.totalorder %v182, %v714
        %vm721 = vcmp.eq.s32.totalorder %v183, %v714
        %vm722 = vcmp.eq.s32.totalorder %v184, %v714
        %v723 = vsel %vm715, 1, 0
        %v724 = vsel %vm716, 1, 0
        %v725 = vsel %vm717, 1, 0
        %v726 = vsel %vm718, 1, 0
        %v727 = vsel %vm719, 1, 0
        %v728 = vsel %vm720, 1, 0
        %v729 = vsel %vm721, 1, 0
        %v730 = vsel %vm722, 1, 0
        %v731 = vcvt.s32.f32 %v723
        %v732 = vcvt.s32.f32 %v724
        %v733 = vcvt.s32.f32 %v725
        %v734 = vcvt.s32.f32 %v726
        %v735 = vcvt.s32.f32 %v727
        %v736 = vcvt.s32.f32 %v728
        %v737 = vcvt.s32.f32 %v729
        %v738 = vcvt.s32.f32 %v730
        %v747 = vcombine.low %v731, %v732
        %v748 = vcombine.low %v733, %v734
        %v749 = vcombine.low %v735, %v736
        %v750 = vcombine.low %v737, %v738
        %v752 = vunpack.c.l.s4 1966171168
        %v753 = vunpack.c.0.s8 %v752
        %v754 = vlaneseq
        %v755 = vshrl.u32 %v754, 7
        %v756 = vsub.s32 %v753, %v755
        %v757 = vrot.slane %v747, %v756
        %v759 = vunpack.c.l.s4 1966171168
        %v760 = vunpack.c.0.s8 %v759
        %v761 = vlaneseq
        %v762 = vshrl.u32 %v761, 7
        %v763 = vsub.s32 %v760, %v762
        %v764 = vrot.slane %v748, %v763
        %v766 = vunpack.c.l.s4 1966171168
        %v767 = vunpack.c.0.s8 %v766
        %v768 = vlaneseq
        %v769 = vshrl.u32 %v768, 7
        %v770 = vsub.s32 %v767, %v769
        %v771 = vrot.slane %v749, %v770
        %v773 = vunpack.c.l.s4 1966171168
        %v774 = vunpack.c.0.s8 %v773
        %v775 = vlaneseq
        %v776 = vshrl.u32 %v775, 7
        %v777 = vsub.s32 %v774, %v776
        %v778 = vrot.slane %v750, %v777
        %v779 = vcombine.low %v757, %v764
        %v780 = vcombine.low %v771, %v778
        %v782 = vunpack.c.l.s4 1966171168
        %v783 = vunpack.c.0.s8 %v782
        %v784 = vlaneseq
        %v785 = vshrl.u32 %v784, 7
        %v786 = vsub.s32 %v783, %v785
        %v787 = vrot.slane %v779, %v786
        %v789 = vunpack.c.l.s4 1966171168
        %v790 = vunpack.c.0.s8 %v789
        %v791 = vlaneseq
        %v792 = vshrl.u32 %v791, 7
        %v793 = vsub.s32 %v790, %v792
        %v794 = vrot.slane %v780, %v793
        %v795 = vcombine.low %v787, %v794
        %s797 = scalar_lea.vmem [#allocation2], 6
        %798 = vst [vmem:[%s797] ss:$8 sm:$0xf] %v795
        %799 = vst [vmem:[%s797] ss:$8 sm:$0xf0] %v795
        %s800 = sadd.s32 %s185, 7
        %s801 = sld [smem:[#allocation4 + %s800]]
        %v802 = vstv %s801
        %vm803 = vcmp.eq.s32.totalorder %v177, %v802
        %vm804 = vcmp.eq.s32.totalorder %v178, %v802
        %vm805 = vcmp.eq.s32.totalorder %v179, %v802
        %vm806 = vcmp.eq.s32.totalorder %v180, %v802
        %vm807 = vcmp.eq.s32.totalorder %v181, %v802
        %vm808 = vcmp.eq.s32.totalorder %v182, %v802
        %vm809 = vcmp.eq.s32.totalorder %v183, %v802
        %vm810 = vcmp.eq.s32.totalorder %v184, %v802
        %v811 = vsel %vm803, 1, 0
        %v812 = vsel %vm804, 1, 0
        %v813 = vsel %vm805, 1, 0
        %v814 = vsel %vm806, 1, 0
        %v815 = vsel %vm807, 1, 0
        %v816 = vsel %vm808, 1, 0
        %v817 = vsel %vm809, 1, 0
        %v818 = vsel %vm810, 1, 0
        %v819 = vcvt.s32.f32 %v811
        %v820 = vcvt.s32.f32 %v812
        %v821 = vcvt.s32.f32 %v813
        %v822 = vcvt.s32.f32 %v814
        %v823 = vcvt.s32.f32 %v815
        %v824 = vcvt.s32.f32 %v816
        %v825 = vcvt.s32.f32 %v817
        %v826 = vcvt.s32.f32 %v818
        %v835 = vcombine.low %v819, %v820
        %v836 = vcombine.low %v821, %v822
        %v837 = vcombine.low %v823, %v824
        %v838 = vcombine.low %v825, %v826
        %v840 = vunpack.c.l.s4 1966171168
        %v841 = vunpack.c.0.s8 %v840
        %v842 = vlaneseq
        %v843 = vshrl.u32 %v842, 7
        %v844 = vsub.s32 %v841, %v843
        %v845 = vrot.slane %v835, %v844
        %v847 = vunpack.c.l.s4 1966171168
        %v848 = vunpack.c.0.s8 %v847
        %v849 = vlaneseq
        %v850 = vshrl.u32 %v849, 7
        %v851 = vsub.s32 %v848, %v850
        %v852 = vrot.slane %v836, %v851
        %v854 = vunpack.c.l.s4 1966171168
        %v855 = vunpack.c.0.s8 %v854
        %v856 = vlaneseq
        %v857 = vshrl.u32 %v856, 7
        %v858 = vsub.s32 %v855, %v857
        %v859 = vrot.slane %v837, %v858
        %v861 = vunpack.c.l.s4 1966171168
        %v862 = vunpack.c.0.s8 %v861
        %v863 = vlaneseq
        %v864 = vshrl.u32 %v863, 7
        %v865 = vsub.s32 %v862, %v864
        %v866 = vrot.slane %v838, %v865
        %v867 = vcombine.low %v845, %v852
        %v868 = vcombine.low %v859, %v866
        %v870 = vunpack.c.l.s4 1966171168
        %v871 = vunpack.c.0.s8 %v870
        %v872 = vlaneseq
        %v873 = vshrl.u32 %v872, 7
        %v874 = vsub.s32 %v871, %v873
        %v875 = vrot.slane %v867, %v874
        %v877 = vunpack.c.l.s4 1966171168
        %v878 = vunpack.c.0.s8 %v877
        %v879 = vlaneseq
        %v880 = vshrl.u32 %v879, 7
        %v881 = vsub.s32 %v878, %v880
        %v882 = vrot.slane %v868, %v881
        %v883 = vcombine.low %v875, %v882
        %s885 = scalar_lea.vmem [#allocation2], 7
        %886 = vst [vmem:[%s885] ss:$8 sm:$0xf] %v883
        %887 = vst [vmem:[%s885] ss:$8 sm:$0xf0] %v883
        %v888 = vld [vmem:[#allocation2] sm:$0xff]
        %v889 = vld [vmem:[#allocation2 + $0x8] sm:$0xff]
        %v890 = vld [vmem:[#allocation2 + $0x10] sm:$0xff]
        %v891 = vld [vmem:[#allocation2 + $0x18] sm:$0xff]
        %v892 = vld [vmem:[#allocation2 + $0x20] sm:$0xff]
        %v893 = vld [vmem:[#allocation2 + $0x28] sm:$0xff]
        %v894 = vld [vmem:[#allocation2 + $0x30] sm:$0xff]
        %v895 = vld [vmem:[#allocation2 + $0x38] sm:$0xff]
        %v896 = vld [vmem:[#allocation5] sm:$0xff]
        %v897 = vld [vmem:[#allocation5 + $0x8] sm:$0xff]
        %v898 = vld [vmem:[#allocation5 + $0x10] sm:$0xff]
        %v899 = vld [vmem:[#allocation5 + $0x18] sm:$0xff]
        %v900 = vld [vmem:[#allocation5 + $0x20] sm:$0xff]
        %v901 = vld [vmem:[#allocation5 + $0x28] sm:$0xff]
        %v902 = vld [vmem:[#allocation5 + $0x30] sm:$0xff]
        %v903 = vld [vmem:[#allocation5 + $0x38] sm:$0xff]
        %v904 = vld [vmem:[#allocation5 + $0x40] sm:$0xff]
        %v905 = vld [vmem:[#allocation5 + $0x48] sm:$0xff]
        %v906 = vld [vmem:[#allocation5 + $0x50] sm:$0xff]
        %v907 = vld [vmem:[#allocation5 + $0x58] sm:$0xff]
        %v908 = vld [vmem:[#allocation5 + $0x60] sm:$0xff]
        %v909 = vld [vmem:[#allocation5 + $0x68] sm:$0xff]
        %v910 = vld [vmem:[#allocation5 + $0x70] sm:$0xff]
        %v911 = vld [vmem:[#allocation5 + $0x78] sm:$0xff]
        %v912 = vld [vmem:[#allocation5 + $0x80] sm:$0xff]
        %v913 = vld [vmem:[#allocation5 + $0x88] sm:$0xff]
        %v914 = vld [vmem:[#allocation5 + $0x90] sm:$0xff]
        %v915 = vld [vmem:[#allocation5 + $0x98] sm:$0xff]
        %v916 = vld [vmem:[#allocation5 + $0xa0] sm:$0xff]
        %v917 = vld [vmem:[#allocation5 + $0xa8] sm:$0xff]
        %v918 = vld [vmem:[#allocation5 + $0xb0] sm:$0xff]
        %v919 = vld [vmem:[#allocation5 + $0xb8] sm:$0xff]
        %v920 = vld [vmem:[#allocation5 + $0xc0] sm:$0xff]
        %v921 = vld [vmem:[#allocation5 + $0xc8] sm:$0xff]
        %v922 = vld [vmem:[#allocation5 + $0xd0] sm:$0xff]
        %v923 = vld [vmem:[#allocation5 + $0xd8] sm:$0xff]
        %v924 = vld [vmem:[#allocation5 + $0xe0] sm:$0xff]
        %v925 = vld [vmem:[#allocation5 + $0xe8] sm:$0xff]
        %v926 = vld [vmem:[#allocation5 + $0xf0] sm:$0xff]
        %v927 = vld [vmem:[#allocation5 + $0xf8] sm:$0xff]
        %v928 = vld [vmem:[#allocation5 + $0x100] sm:$0xff]
        %v929 = vld [vmem:[#allocation5 + $0x108] sm:$0xff]
        %v930 = vld [vmem:[#allocation5 + $0x110] sm:$0xff]
        %v931 = vld [vmem:[#allocation5 + $0x118] sm:$0xff]
        %v932 = vld [vmem:[#allocation5 + $0x120] sm:$0xff]
        %v933 = vld [vmem:[#allocation5 + $0x128] sm:$0xff]
        %v934 = vld [vmem:[#allocation5 + $0x130] sm:$0xff]
        %v935 = vld [vmem:[#allocation5 + $0x138] sm:$0xff]
        %v936 = vld [vmem:[#allocation5 + $0x140] sm:$0xff]
        %v937 = vld [vmem:[#allocation5 + $0x148] sm:$0xff]
        %v938 = vld [vmem:[#allocation5 + $0x150] sm:$0xff]
        %v939 = vld [vmem:[#allocation5 + $0x158] sm:$0xff]
        %v940 = vld [vmem:[#allocation5 + $0x160] sm:$0xff]
        %v941 = vld [vmem:[#allocation5 + $0x168] sm:$0xff]
        %v942 = vld [vmem:[#allocation5 + $0x170] sm:$0xff]
        %v943 = vld [vmem:[#allocation5 + $0x178] sm:$0xff]
        %v944 = vld [vmem:[#allocation5 + $0x180] sm:$0xff]
        %v945 = vld [vmem:[#allocation5 + $0x188] sm:$0xff]
        %v946 = vld [vmem:[#allocation5 + $0x190] sm:$0xff]
        %v947 = vld [vmem:[#allocation5 + $0x198] sm:$0xff]
        %v948 = vld [vmem:[#allocation5 + $0x1a0] sm:$0xff]
        %v949 = vld [vmem:[#allocation5 + $0x1a8] sm:$0xff]
        %v950 = vld [vmem:[#allocation5 + $0x1b0] sm:$0xff]
        %v951 = vld [vmem:[#allocation5 + $0x1b8] sm:$0xff]
        %v952 = vld [vmem:[#allocation5 + $0x1c0] sm:$0xff]
        %v953 = vld [vmem:[#allocation5 + $0x1c8] sm:$0xff]
        %v954 = vld [vmem:[#allocation5 + $0x1d0] sm:$0xff]
        %v955 = vld [vmem:[#allocation5 + $0x1d8] sm:$0xff]
        %v956 = vld [vmem:[#allocation5 + $0x1e0] sm:$0xff]
        %v957 = vld [vmem:[#allocation5 + $0x1e8] sm:$0xff]
        %v958 = vld [vmem:[#allocation5 + $0x1f0] sm:$0xff]
        %v959 = vld [vmem:[#allocation5 + $0x1f8] sm:$0xff]
        %v960 = vld [vmem:[#allocation5 + $0x200] sm:$0xff]
        %v961 = vld [vmem:[#allocation5 + $0x208] sm:$0xff]
        %v962 = vld [vmem:[#allocation5 + $0x210] sm:$0xff]
        %v963 = vld [vmem:[#allocation5 + $0x218] sm:$0xff]
        %v964 = vld [vmem:[#allocation5 + $0x220] sm:$0xff]
        %v965 = vld [vmem:[#allocation5 + $0x228] sm:$0xff]
        %v966 = vld [vmem:[#allocation5 + $0x230] sm:$0xff]
        %v967 = vld [vmem:[#allocation5 + $0x238] sm:$0xff]
        %v968 = vld [vmem:[#allocation5 + $0x240] sm:$0xff]
        %v969 = vld [vmem:[#allocation5 + $0x248] sm:$0xff]
        %v970 = vld [vmem:[#allocation5 + $0x250] sm:$0xff]
        %v971 = vld [vmem:[#allocation5 + $0x258] sm:$0xff]
        %v972 = vld [vmem:[#allocation5 + $0x260] sm:$0xff]
        %v973 = vld [vmem:[#allocation5 + $0x268] sm:$0xff]
        %v974 = vld [vmem:[#allocation5 + $0x270] sm:$0xff]
        %v975 = vld [vmem:[#allocation5 + $0x278] sm:$0xff]
        %v976 = vld [vmem:[#allocation5 + $0x280] sm:$0xff]
        %v977 = vld [vmem:[#allocation5 + $0x288] sm:$0xff]
        %v978 = vld [vmem:[#allocation5 + $0x290] sm:$0xff]
        %v979 = vld [vmem:[#allocation5 + $0x298] sm:$0xff]
        %v980 = vld [vmem:[#allocation5 + $0x2a0] sm:$0xff]
        %v981 = vld [vmem:[#allocation5 + $0x2a8] sm:$0xff]
        %v982 = vld [vmem:[#allocation5 + $0x2b0] sm:$0xff]
        %v983 = vld [vmem:[#allocation5 + $0x2b8] sm:$0xff]
        %v984 = vld [vmem:[#allocation5 + $0x2c0] sm:$0xff]
        %v985 = vld [vmem:[#allocation5 + $0x2c8] sm:$0xff]
        %v986 = vld [vmem:[#allocation5 + $0x2d0] sm:$0xff]
        %v987 = vld [vmem:[#allocation5 + $0x2d8] sm:$0xff]
        %v988 = vld [vmem:[#allocation5 + $0x2e0] sm:$0xff]
        %v989 = vld [vmem:[#allocation5 + $0x2e8] sm:$0xff]
        %v990 = vld [vmem:[#allocation5 + $0x2f0] sm:$0xff]
        %v991 = vld [vmem:[#allocation5 + $0x2f8] sm:$0xff]
        %v992 = vld [vmem:[#allocation5 + $0x300] sm:$0xff]
        %v993 = vld [vmem:[#allocation5 + $0x308] sm:$0xff]
        %v994 = vld [vmem:[#allocation5 + $0x310] sm:$0xff]
        %v995 = vld [vmem:[#allocation5 + $0x318] sm:$0xff]
        %v996 = vld [vmem:[#allocation5 + $0x320] sm:$0xff]
        %v997 = vld [vmem:[#allocation5 + $0x328] sm:$0xff]
        %v998 = vld [vmem:[#allocation5 + $0x330] sm:$0xff]
        %v999 = vld [vmem:[#allocation5 + $0x338] sm:$0xff]
        %v1000 = vld [vmem:[#allocation5 + $0x340] sm:$0xff]
        %v1001 = vld [vmem:[#allocation5 + $0x348] sm:$0xff]
        %v1002 = vld [vmem:[#allocation5 + $0x350] sm:$0xff]
        %v1003 = vld [vmem:[#allocation5 + $0x358] sm:$0xff]
        %v1004 = vld [vmem:[#allocation5 + $0x360] sm:$0xff]
        %v1005 = vld [vmem:[#allocation5 + $0x368] sm:$0xff]
        %v1006 = vld [vmem:[#allocation5 + $0x370] sm:$0xff]
        %v1007 = vld [vmem:[#allocation5 + $0x378] sm:$0xff]
        %v1008 = vld [vmem:[#allocation5 + $0x380] sm:$0xff]
        %v1009 = vld [vmem:[#allocation5 + $0x388] sm:$0xff]
        %v1010 = vld [vmem:[#allocation5 + $0x390] sm:$0xff]
        %v1011 = vld [vmem:[#allocation5 + $0x398] sm:$0xff]
        %v1012 = vld [vmem:[#allocation5 + $0x3a0] sm:$0xff]
        %v1013 = vld [vmem:[#allocation5 + $0x3a8] sm:$0xff]
        %v1014 = vld [vmem:[#allocation5 + $0x3b0] sm:$0xff]
        %v1015 = vld [vmem:[#allocation5 + $0x3b8] sm:$0xff]
        %v1016 = vld [vmem:[#allocation5 + $0x3c0] sm:$0xff]
        %v1017 = vld [vmem:[#allocation5 + $0x3c8] sm:$0xff]
        %v1018 = vld [vmem:[#allocation5 + $0x3d0] sm:$0xff]
        %v1019 = vld [vmem:[#allocation5 + $0x3d8] sm:$0xff]
        %v1020 = vld [vmem:[#allocation5 + $0x3e0] sm:$0xff]
        %v1021 = vld [vmem:[#allocation5 + $0x3e8] sm:$0xff]
        %v1022 = vld [vmem:[#allocation5 + $0x3f0] sm:$0xff]
        %v1023 = vld [vmem:[#allocation5 + $0x3f8] sm:$0xff]
        %v1024 = vld [vmem:[%s156] sm:$0x1]
        %v1026 = vlaneseq
        %v1027 = vshrl.u32 %v1026, 7
        %v1028 = vsub.s32 0, %v1027
        %v1029 = vrot.slane %v1024, %v1028
        %1031 = vmatprep.subr.mxu0 0.0
        %1032 = vmatpush1.msra.mxu0 %v896
        %1033 = vmatprep.subr.mxu0 0.0
        %1034 = vmatpush1.msra.mxu0 %v897
        %1035 = vmatprep.subr.mxu0 0.0
        %1036 = vmatpush1.msra.mxu0 %v898
        %1037 = vmatprep.subr.mxu0 0.0
        %1038 = vmatpush1.msra.mxu0 %v899
        %1039 = vmatprep.subr.mxu0 0.0
        %1040 = vmatpush1.msra.mxu0 %v900
        %1041 = vmatprep.subr.mxu0 0.0
        %1042 = vmatpush1.msra.mxu0 %v901
        %1043 = vmatprep.subr.mxu0 0.0
        %1044 = vmatpush1.msra.mxu0 %v902
        %1045 = vmatprep.subr.mxu0 0.0
        %1046 = vmatpush1.msra.mxu0 %v903
        %1047 = vmatprep.subr.mxu0 0.0
        %1048 = vmatpush1.msra.mxu0 %v904
        %1049 = vmatprep.subr.mxu0 0.0
        %1050 = vmatpush1.msra.mxu0 %v905
        %1051 = vmatprep.subr.mxu0 0.0
        %1052 = vmatpush1.msra.mxu0 %v906
        %1053 = vmatprep.subr.mxu0 0.0
        %1054 = vmatpush1.msra.mxu0 %v907
        %1055 = vmatprep.subr.mxu0 0.0
        %1056 = vmatpush1.msra.mxu0 %v908
        %1057 = vmatprep.subr.mxu0 0.0
        %1058 = vmatpush1.msra.mxu0 %v909
        %1059 = vmatprep.subr.mxu0 0.0
        %1060 = vmatpush1.msra.mxu0 %v910
        %1061 = vmatprep.subr.mxu0 0.0
        %1062 = vmatpush1.msra.mxu0 %v911
        %1063 = vmatprep.subr.mxu0 0.0
        %1064 = vmatpush1.msra.mxu0 %v912
        %1065 = vmatprep.subr.mxu0 0.0
        %1066 = vmatpush1.msra.mxu0 %v913
        %1067 = vmatprep.subr.mxu0 0.0
        %1068 = vmatpush1.msra.mxu0 %v914
        %1069 = vmatprep.subr.mxu0 0.0
        %1070 = vmatpush1.msra.mxu0 %v915
        %1071 = vmatprep.subr.mxu0 0.0
        %1072 = vmatpush1.msra.mxu0 %v916
        %1073 = vmatprep.subr.mxu0 0.0
        %1074 = vmatpush1.msra.mxu0 %v917
        %1075 = vmatprep.subr.mxu0 0.0
        %1076 = vmatpush1.msra.mxu0 %v918
        %1077 = vmatprep.subr.mxu0 0.0
        %1078 = vmatpush1.msra.mxu0 %v919
        %1079 = vmatprep.subr.mxu0 0.0
        %1080 = vmatpush1.msra.mxu0 %v920
        %1081 = vmatprep.subr.mxu0 0.0
        %1082 = vmatpush1.msra.mxu0 %v921
        %1083 = vmatprep.subr.mxu0 0.0
        %1084 = vmatpush1.msra.mxu0 %v922
        %1085 = vmatprep.subr.mxu0 0.0
        %1086 = vmatpush1.msra.mxu0 %v923
        %1087 = vmatprep.subr.mxu0 0.0
        %1088 = vmatpush1.msra.mxu0 %v924
        %1089 = vmatprep.subr.mxu0 0.0
        %1090 = vmatpush1.msra.mxu0 %v925
        %1091 = vmatprep.subr.mxu0 0.0
        %1092 = vmatpush1.msra.mxu0 %v926
        %1093 = vmatprep.subr.mxu0 0.0
        %1094 = vmatpush1.msra.mxu0 %v927
        %1095 = vmatprep.mubr.f32.mxu0 %v889
        %1096 = vmatmul.mubr.f32.gmra.mrb[0].mxu0 %v888
        %v1097 = vpop.f32.mrb[0].mxu0
        %v1098 = vadd.f32 %v1029, %v1097
        %v1099 = vpop.f32.mrb[0].mxu0
        %1100 = vdwg.mxu0
        %1101 = vmatprep.subr.mxu0 0.0
        %1102 = vmatpush1.msra.mxu0 %v928
        %1103 = vmatprep.subr.mxu0 0.0
        %1104 = vmatpush1.msra.mxu0 %v929
        %1105 = vmatprep.subr.mxu0 0.0
        %1106 = vmatpush1.msra.mxu0 %v930
        %1107 = vmatprep.subr.mxu0 0.0
        %1108 = vmatpush1.msra.mxu0 %v931
        %1109 = vmatprep.subr.mxu0 0.0
        %1110 = vmatpush1.msra.mxu0 %v932
        %1111 = vmatprep.subr.mxu0 0.0
        %1112 = vmatpush1.msra.mxu0 %v933
        %1113 = vmatprep.subr.mxu0 0.0
        %1114 = vmatpush1.msra.mxu0 %v934
        %1115 = vmatprep.subr.mxu0 0.0
        %1116 = vmatpush1.msra.mxu0 %v935
        %1117 = vmatprep.subr.mxu0 0.0
        %1118 = vmatpush1.msra.mxu0 %v936
        %1119 = vmatprep.subr.mxu0 0.0
        %1120 = vmatpush1.msra.mxu0 %v937
        %1121 = vmatprep.subr.mxu0 0.0
        %1122 = vmatpush1.msra.mxu0 %v938
        %1123 = vmatprep.subr.mxu0 0.0
        %1124 = vmatpush1.msra.mxu0 %v939
        %1125 = vmatprep.subr.mxu0 0.0
        %1126 = vmatpush1.msra.mxu0 %v940
        %1127 = vmatprep.subr.mxu0 0.0
        %1128 = vmatpush1.msra.mxu0 %v941
        %1129 = vmatprep.subr.mxu0 0.0
        %1130 = vmatpush1.msra.mxu0 %v942
        %1131 = vmatprep.subr.mxu0 0.0
        %1132 = vmatpush1.msra.mxu0 %v943
        %1133 = vmatprep.subr.mxu0 0.0
        %1134 = vmatpush1.msra.mxu0 %v944
        %1135 = vmatprep.subr.mxu0 0.0
        %1136 = vmatpush1.msra.mxu0 %v945
        %1137 = vmatprep.subr.mxu0 0.0
        %1138 = vmatpush1.msra.mxu0 %v946
        %1139 = vmatprep.subr.mxu0 0.0
        %1140 = vmatpush1.msra.mxu0 %v947
        %1141 = vmatprep.subr.mxu0 0.0
        %1142 = vmatpush1.msra.mxu0 %v948
        %1143 = vmatprep.subr.mxu0 0.0
        %1144 = vmatpush1.msra.mxu0 %v949
        %1145 = vmatprep.subr.mxu0 0.0
        %1146 = vmatpush1.msra.mxu0 %v950
        %1147 = vmatprep.subr.mxu0 0.0
        %1148 = vmatpush1.msra.mxu0 %v951
        %1149 = vmatprep.subr.mxu0 0.0
        %1150 = vmatpush1.msra.mxu0 %v952
        %1151 = vmatprep.subr.mxu0 0.0
        %1152 = vmatpush1.msra.mxu0 %v953
        %1153 = vmatprep.subr.mxu0 0.0
        %1154 = vmatpush1.msra.mxu0 %v954
        %1155 = vmatprep.subr.mxu0 0.0
        %1156 = vmatpush1.msra.mxu0 %v955
        %1157 = vmatprep.subr.mxu0 0.0
        %1158 = vmatpush1.msra.mxu0 %v956
        %1159 = vmatprep.subr.mxu0 0.0
        %1160 = vmatpush1.msra.mxu0 %v957
        %1161 = vmatprep.subr.mxu0 0.0
        %1162 = vmatpush1.msra.mxu0 %v958
        %1163 = vmatprep.subr.mxu0 0.0
        %1164 = vmatpush1.msra.mxu0 %v959
        %1165 = vmatprep.mubr.f32.mxu0 %v891
        %1166 = vmatmul.mubr.f32.gmra.mrb[0].mxu0 %v890
        %v1167 = vpop.f32.mrb[0].mxu0
        %v1168 = vadd.f32 %v1098, %v1167
        %v1169 = vpop.f32.mrb[0].mxu0
        %1170 = vdwg.mxu0
        %1171 = vmatprep.subr.mxu0 0.0
        %1172 = vmatpush1.msra.mxu0 %v960
        %1173 = vmatprep.subr.mxu0 0.0
        %1174 = vmatpush1.msra.mxu0 %v961
        %1175 = vmatprep.subr.mxu0 0.0
        %1176 = vmatpush1.msra.mxu0 %v962
        %1177 = vmatprep.subr.mxu0 0.0
        %1178 = vmatpush1.msra.mxu0 %v963
        %1179 = vmatprep.subr.mxu0 0.0
        %1180 = vmatpush1.msra.mxu0 %v964
        %1181 = vmatprep.subr.mxu0 0.0
        %1182 = vmatpush1.msra.mxu0 %v965
        %1183 = vmatprep.subr.mxu0 0.0
        %1184 = vmatpush1.msra.mxu0 %v966
        %1185 = vmatprep.subr.mxu0 0.0
        %1186 = vmatpush1.msra.mxu0 %v967
        %1187 = vmatprep.subr.mxu0 0.0
        %1188 = vmatpush1.msra.mxu0 %v968
        %1189 = vmatprep.subr.mxu0 0.0
        %1190 = vmatpush1.msra.mxu0 %v969
        %1191 = vmatprep.subr.mxu0 0.0
        %1192 = vmatpush1.msra.mxu0 %v970
        %1193 = vmatprep.subr.mxu0 0.0
        %1194 = vmatpush1.msra.mxu0 %v971
        %1195 = vmatprep.subr.mxu0 0.0
        %1196 = vmatpush1.msra.mxu0 %v972
        %1197 = vmatprep.subr.mxu0 0.0
        %1198 = vmatpush1.msra.mxu0 %v973
        %1199 = vmatprep.subr.mxu0 0.0
        %1200 = vmatpush1.msra.mxu0 %v974
        %1201 = vmatprep.subr.mxu0 0.0
        %1202 = vmatpush1.msra.mxu0 %v975
        %1203 = vmatprep.subr.mxu0 0.0
        %1204 = vmatpush1.msra.mxu0 %v976
        %1205 = vmatprep.subr.mxu0 0.0
        %1206 = vmatpush1.msra.mxu0 %v977
        %1207 = vmatprep.subr.mxu0 0.0
        %1208 = vmatpush1.msra.mxu0 %v978
        %1209 = vmatprep.subr.mxu0 0.0
        %1210 = vmatpush1.msra.mxu0 %v979
        %1211 = vmatprep.subr.mxu0 0.0
        %1212 = vmatpush1.msra.mxu0 %v980
        %1213 = vmatprep.subr.mxu0 0.0
        %1214 = vmatpush1.msra.mxu0 %v981
        %1215 = vmatprep.subr.mxu0 0.0
        %1216 = vmatpush1.msra.mxu0 %v982
        %1217 = vmatprep.subr.mxu0 0.0
        %1218 = vmatpush1.msra.mxu0 %v983
        %1219 = vmatprep.subr.mxu0 0.0
        %1220 = vmatpush1.msra.mxu0 %v984
        %1221 = vmatprep.subr.mxu0 0.0
        %1222 = vmatpush1.msra.mxu0 %v985
        %1223 = vmatprep.subr.mxu0 0.0
        %1224 = vmatpush1.msra.mxu0 %v986
        %1225 = vmatprep.subr.mxu0 0.0
        %1226 = vmatpush1.msra.mxu0 %v987
        %1227 = vmatprep.subr.mxu0 0.0
        %1228 = vmatpush1.msra.mxu0 %v988
        %1229 = vmatprep.subr.mxu0 0.0
        %1230 = vmatpush1.msra.mxu0 %v989
        %1231 = vmatprep.subr.mxu0 0.0
        %1232 = vmatpush1.msra.mxu0 %v990
        %1233 = vmatprep.subr.mxu0 0.0
        %1234 = vmatpush1.msra.mxu0 %v991
        %1235 = vmatprep.mubr.f32.mxu0 %v893
        %1236 = vmatmul.mubr.f32.gmra.mrb[0].mxu0 %v892
        %v1237 = vpop.f32.mrb[0].mxu0
        %v1238 = vadd.f32 %v1168, %v1237
        %v1239 = vpop.f32.mrb[0].mxu0
        %1240 = vdwg.mxu0
        %1241 = vmatprep.subr.mxu0 0.0
        %1242 = vmatpush1.msra.mxu0 %v992
        %1243 = vmatprep.subr.mxu0 0.0
        %1244 = vmatpush1.msra.mxu0 %v993
        %1245 = vmatprep.subr.mxu0 0.0
        %1246 = vmatpush1.msra.mxu0 %v994
        %1247 = vmatprep.subr.mxu0 0.0
        %1248 = vmatpush1.msra.mxu0 %v995
        %1249 = vmatprep.subr.mxu0 0.0
        %1250 = vmatpush1.msra.mxu0 %v996
        %1251 = vmatprep.subr.mxu0 0.0
        %1252 = vmatpush1.msra.mxu0 %v997
        %1253 = vmatprep.subr.mxu0 0.0
        %1254 = vmatpush1.msra.mxu0 %v998
        %1255 = vmatprep.subr.mxu0 0.0
        %1256 = vmatpush1.msra.mxu0 %v999
        %1257 = vmatprep.subr.mxu0 0.0
        %1258 = vmatpush1.msra.mxu0 %v1000
        %1259 = vmatprep.subr.mxu0 0.0
        %1260 = vmatpush1.msra.mxu0 %v1001
        %1261 = vmatprep.subr.mxu0 0.0
        %1262 = vmatpush1.msra.mxu0 %v1002
        %1263 = vmatprep.subr.mxu0 0.0
        %1264 = vmatpush1.msra.mxu0 %v1003
        %1265 = vmatprep.subr.mxu0 0.0
        %1266 = vmatpush1.msra.mxu0 %v1004
        %1267 = vmatprep.subr.mxu0 0.0
        %1268 = vmatpush1.msra.mxu0 %v1005
        %1269 = vmatprep.subr.mxu0 0.0
        %1270 = vmatpush1.msra.mxu0 %v1006
        %1271 = vmatprep.subr.mxu0 0.0
        %1272 = vmatpush1.msra.mxu0 %v1007
        %1273 = vmatprep.subr.mxu0 0.0
        %1274 = vmatpush1.msra.mxu0 %v1008
        %1275 = vmatprep.subr.mxu0 0.0
        %1276 = vmatpush1.msra.mxu0 %v1009
        %1277 = vmatprep.subr.mxu0 0.0
        %1278 = vmatpush1.msra.mxu0 %v1010
        %1279 = vmatprep.subr.mxu0 0.0
        %1280 = vmatpush1.msra.mxu0 %v1011
        %1281 = vmatprep.subr.mxu0 0.0
        %1282 = vmatpush1.msra.mxu0 %v1012
        %1283 = vmatprep.subr.mxu0 0.0
        %1284 = vmatpush1.msra.mxu0 %v1013
        %1285 = vmatprep.subr.mxu0 0.0
        %1286 = vmatpush1.msra.mxu0 %v1014
        %1287 = vmatprep.subr.mxu0 0.0
        %1288 = vmatpush1.msra.mxu0 %v1015
        %1289 = vmatprep.subr.mxu0 0.0
        %1290 = vmatpush1.msra.mxu0 %v1016
        %1291 = vmatprep.subr.mxu0 0.0
        %1292 = vmatpush1.msra.mxu0 %v1017
        %1293 = vmatprep.subr.mxu0 0.0
        %1294 = vmatpush1.msra.mxu0 %v1018
        %1295 = vmatprep.subr.mxu0 0.0
        %1296 = vmatpush1.msra.mxu0 %v1019
        %1297 = vmatprep.subr.mxu0 0.0
        %1298 = vmatpush1.msra.mxu0 %v1020
        %1299 = vmatprep.subr.mxu0 0.0
        %1300 = vmatpush1.msra.mxu0 %v1021
        %1301 = vmatprep.subr.mxu0 0.0
        %1302 = vmatpush1.msra.mxu0 %v1022
        %1303 = vmatprep.subr.mxu0 0.0
        %1304 = vmatpush1.msra.mxu0 %v1023
        %1305 = vmatprep.mubr.f32.mxu0 %v895
        %1306 = vmatmul.mubr.f32.gmra.mrb[0].mxu0 %v894
        %v1307 = vpop.f32.mrb[0].mxu0
        %v1308 = vadd.f32 %v1238, %v1307
        %v1309 = vpop.f32.mrb[0].mxu0
        %1310 = vdwg.mxu0
        %1311 = vst [vmem:[%s175] sm:$0xff] %v1308
        %s1312 = sand.u32 %s80, 1
        %s1313 = scalar_lea.sflag [#allocation7], %s1312
        %s1314 = sand.u32 %s80, 1
        %s1315 = smul.addr %s1314, 8
        %s1316 = scalar_lea.vmem [#allocation10], %s1315
        // Predicated region
        $region37: #{tpu_custom_call.1} parent=27 // pred_check
          %p1317 = pneg %p90
        $region38: #{tpu_custom_call.1} parent=27 // pred_check_branch
          %1319 = sbr.rel (%p1317) target = $region40
        $region39: #{tpu_custom_call.1} parent=27 // pred_region
          %s1321 = ssub.s32 128, 128
          %1322 = vsyncadd %s1313, %s1321
          %s1323 = smul.addr %s25, 128
          %s1324 = scalar_lea.hbm %s3, %s1323
          %s1326 = sshll.u32 %s1316, 4
          %s1327 = int_to_ptr.vmem [resolvable:$true] %s1326
          %1329 = dma.vmem_to_hbm [thread:$0]  %s1327, 128, %s1324, %s1313
        $region40: #{tpu_custom_call.1} parent=27 // pred_fallthru
          _
      $region28: #{tpu_custom_call.1} parent=5 // pred_fallthru
        _
      %p1330 = scmp.le.s32.totalorder 2, %s20
      // Predicated region
      $region41: #{tpu_custom_call.1} parent=5 // pred_check
        %p1331 = pneg %p1330
      $region42: #{tpu_custom_call.1} parent=5 // pred_check_branch
        %1333 = sbr.rel (%p1331) target = $region44
      $region43: #{tpu_custom_call.1} parent=5 // pred_region
        %s1334 = ssub.s32 %s20, 2
        // Predicated region
        $region45: #{tpu_custom_call.1} parent=43 // pred_check
          %p1335 = pneg %p96
        $region46: #{tpu_custom_call.1} parent=43 // pred_check_branch
          %1337 = sbr.rel (%p1335) target = $region48
        $region47: #{tpu_custom_call.1} parent=43 // pred_region
          %s1338 = sand.u32 %s81, 1
          %s1339 = scalar_lea.sflag [#allocation7], %s1338
          %s1340 = sand.u32 %s81, 1
          %s1341 = smul.addr %s1340, 8
          %s1342 = scalar_lea.vmem [#allocation10], %s1341
          %1343 = dma.done %s1339, 128
        $region48: #{tpu_custom_call.1} parent=43 // pred_fallthru
          _
      $region44: #{tpu_custom_call.1} parent=5 // pred_fallthru
        _
    $region6: #{tpu_custom_call.1} parent=1 // loop_footer
      %s24 = sadd.s32 1, %s20
    $region7: #{tpu_custom_call.1} parent=1 // loop_footer_branch
      %19 = sbr.rel target = $region3
    $region8: #{tpu_custom_call.1} parent=1 // loop_exit
      _
    %1344 = vsyncpa [#allocation6], 1
    %s1345 = scalar_lea.sflag [#allocation6], 1
    %1346 = vsyncpa %s1345, 1
    %1347 = vsyncpa [#allocation9], 1
    %s1348 = scalar_lea.sflag [#allocation9], 1
    %1349 = vsyncpa %s1348, 1
    %1350 = vsyncpa [#allocation7], 1
    %s1351 = scalar_lea.sflag [#allocation7], 1
    %1352 = vsyncpa %s1351, 1

</llo_original>
